<compile_context>
chip_gen: v7x
topology: tpu7x:2x2x1
jax: 0.10.0
libtpu: 0.0.40
codegen_flags: <defaults>
</compile_context>

<pallas_src>
import jax
import jax.numpy as jnp
from jax.experimental import pallas as pl
from jax.experimental.pallas import tpu as pltpu

HID = 50       # logical hidden width (matches nn.Linear(.., 50))
HID_PAD = 64   # sublane-aligned padded hidden width used inside the kernel


def _round_up(x, m):
    return ((x + m - 1) // m) * m


def mlp_kernel(x_ref, w1_ref, w2_ref, w3_ref, b_ref, o_ref):
    # x_ref:  (TB, D)        natural batch-major input tile
    # w1_ref: (HID_PAD, D)   PyTorch layout (out, in), zero-padded rows
    # w2_ref: (HID_PAD, HID_PAD)
    # w3_ref: (1, HID_PAD)
    # b_ref:  (HID_PAD, 3)   packed biases [b1 | b2 | b3(row 0 only)]
    # o_ref:  (1, TB)        lane-dense transposed output tile
    b1 = b_ref[:, 0:1]          # (HID_PAD, 1) broadcasts over lanes
    b2 = b_ref[:, 1:2]
    b3 = b_ref[0:1, 2:3]        # (1, 1)

    prec = jax.lax.Precision.HIGHEST

    # In-kernel transpose of the small tile: batch goes to the 128-lane axis.
    x_t = x_ref[...].T                                            # (D, TB)

    h1 = jnp.dot(w1_ref[...], x_t,
                 preferred_element_type=jnp.float32, precision=prec) + b1
    h1 = jnp.maximum(h1, 0.0)                                     # (HID_PAD, TB)
    h2 = jnp.dot(w2_ref[...], h1,
                 preferred_element_type=jnp.float32, precision=prec) + b2
    h2 = jnp.maximum(h2, 0.0)                                     # (HID_PAD, TB)
    y = jnp.dot(w3_ref[...], h2,
                preferred_element_type=jnp.float32, precision=prec) + b3
    o_ref[...] = y.astype(o_ref.dtype)                            # (1, TB)


def pack_params(params):
    """One-time packing of PyTorch-layout params (hoisted out of the forward).

    Padded hidden units have zero weights/bias -> relu(0)=0 and zero outgoing
    weights, so results are unchanged."""
    w1, b1 = params["w1"], params["b1"]
    w2, b2 = params["w2"], params["b2"]
    w3, b3 = params["w3"], params["b3"]
    D = w1.shape[1]
    w1p = jnp.zeros((HID_PAD, D), jnp.float32).at[:HID, :].set(w1)
    w2p = jnp.zeros((HID_PAD, HID_PAD), jnp.float32).at[:HID, :HID].set(w2)
    w3p = jnp.zeros((1, HID_PAD), jnp.float32).at[:, :HID].set(w3)
    bpack = (
        jnp.zeros((HID_PAD, 3), jnp.float32)
        .at[:HID, 0].set(b1)
        .at[:HID, 1].set(b2)
        .at[0, 2].set(b3[0])
    )
    return {"w1p": w1p, "w2p": w2p, "w3p": w3p, "bpack": bpack}


def net_forward(x, packed, *, tb=8192):
    """x: (B, D) f32 in natural layout.  packed: output of pack_params().
    Returns (B, 1) f32 matching PyTorch Net.forward."""
    B, D = x.shape
    w1p, w2p, w3p, bpack = packed["w1p"], packed["w2p"], packed["w3p"], packed["bpack"]

    # Output lane axis must be a 128-multiple; x itself is NOT copied/padded.
    B_pad = _round_up(B, 128)
    # Keep >= 2 grid steps when the batch allows it so the "parallel" batch
    # axis can shard across both TensorCores on v7x.
    TB = min(tb, max(128, _round_up(pl.cdiv(B_pad, 2), 128)))
    grid = (pl.cdiv(B_pad, TB),)

    out_t = pl.pallas_call(
        mlp_kernel,
        out_shape=jax.ShapeDtypeStruct((1, B_pad), jnp.float32),
        grid=grid,
        in_specs=[
            # Natural (B, D) layout, contiguous DMA per tile.  The last block
            # may be partial: rows >= B are unspecified but only feed output
            # lanes that are sliced away below (no cross-lane reductions).
            pl.BlockSpec((TB, D), lambda i: (i, 0)),
            pl.BlockSpec((HID_PAD, D), lambda i: (0, 0)),        # resident weights
            pl.BlockSpec((HID_PAD, HID_PAD), lambda i: (0, 0)),
            pl.BlockSpec((1, HID_PAD), lambda i: (0, 0)),
            pl.BlockSpec((HID_PAD, 3), lambda i: (0, 0)),        # packed biases
        ],
        out_specs=pl.BlockSpec((1, TB), lambda i: (0, i)),       # lane-dense output
        compiler_params=pltpu.CompilerParams(
            dimension_semantics=("parallel",),                   # megacore split
            vmem_limit_bytes=32 * 1024 * 1024,
        ),
    )(x, w1p, w2p, w3p, bpack)

    # Keep this slice: it discards the lanes produced from OOB/padded rows.
    return out_t[:, :B].T                                        # (B, 1)


def init_params(key, input_dim=10, hidden=HID):
    """Deterministic init mimicking nn.Linear's U(-1/sqrt(fan_in), 1/sqrt(fan_in)).
    Weights kept in PyTorch layout (out_features, in_features)."""
    ks = jax.random.split(key, 6)

    def linear(kw, kb, fan_in, fan_out):
        bound = 1.0 / jnp.sqrt(fan_in)
        w = jax.random.uniform(kw, (fan_out, fan_in), jnp.float32, -bound, bound)
        b = jax.random.uniform(kb, (fan_out,), jnp.float32, -bound, bound)
        return w, b

    w1, b1 = linear(ks[0], ks[1], input_dim, hidden)
    w2, b2 = linear(ks[2], ks[3], hidden, hidden)
    w3, b3 = linear(ks[4], ks[5], hidden, 1)
    return {"w1": w1, "b1": b1, "w2": w2, "b2": b2, "w3": w3, "b3": b3}


def net_forward_ref(x, params):
    """Pure-JAX reference matching PyTorch: y = x @ W.T + b with ReLUs.
    Pinned to HIGHEST precision so the reference itself is accurate f32."""
    prec = jax.lax.Precision.HIGHEST
    h1 = jnp.maximum(jnp.dot(x, params["w1"].T, precision=prec) + params["b1"], 0.0)
    h2 = jnp.maximum(jnp.dot(h1, params["w2"].T, precision=prec) + params["b2"], 0.0)
    return jnp.dot(h2, params["w3"].T, precision=prec) + params["b3"]


if __name__ == "__main__":
    key = jax.random.PRNGKey(0)
    k_x, k_x2, k_p = jax.random.split(key, 3)

    input_dim = 10
    params = init_params(k_p, input_dim=input_dim)
    packed = pack_params(params)

    fwd = jax.jit(net_forward)

    # Small-batch check (B=8): single (partial) tile.
    x = jax.random.normal(k_x, (8, input_dim), jnp.float32)
    out = jax.block_until_ready(fwd(x, packed))
    ref = net_forward_ref(x, params)
    assert out.shape == (8, 1), out.shape
    assert jnp.allclose(out, ref, atol=1e-5, rtol=1e-5), float(jnp.max(jnp.abs(out - ref)))

    # Multi-tile check with a non-128-multiple batch (exercises cdiv grid and
    # the partial last block on both input and output).
    x2 = jax.random.normal(k_x2, (300, input_dim), jnp.float32)
    out2 = jax.block_until_ready(fwd(x2, packed))
    ref2 = net_forward_ref(x2, params)
    assert out2.shape == (300, 1), out2.shape
    assert jnp.allclose(out2, ref2, atol=1e-5, rtol=1e-5), float(jnp.max(jnp.abs(out2 - ref2)))

    print("KERNEL_OK")
</pallas_src>

<mosaic_0001>
module attributes {stable_mosaic.version = 11 : i64} {
  func.func @mlp_kernel(%arg0: i32, %arg1: memref<128x10xf32, #tpu.memory_space<vmem>>, %arg2: memref<64x10xf32, #tpu.memory_space<vmem>>, %arg3: memref<64x64xf32, #tpu.memory_space<vmem>>, %arg4: memref<1x64xf32, #tpu.memory_space<vmem>>, %arg5: memref<64x3xf32, #tpu.memory_space<vmem>>, %arg6: memref<1x128xf32, #tpu.memory_space<vmem>>) attributes {dimension_semantics = [#tpu.dimension_semantics<parallel>], iteration_bounds = array<i64: 1>, scalar_prefetch = 0 : i64, scratch_operands = 0 : i64, tpu.core_type = #tpu.core_type<tc>, window_params = [{transform_indices = @transform_0, window_bounds = array<i64: 128, 10>}, {pipeline_mode = #tpu.pipeline_mode<synchronous>, transform_indices = @transform_1, window_bounds = array<i64: 64, 10>}, {pipeline_mode = #tpu.pipeline_mode<synchronous>, transform_indices = @transform_2, window_bounds = array<i64: 64, 64>}, {pipeline_mode = #tpu.pipeline_mode<synchronous>, transform_indices = @transform_3, window_bounds = array<i64: 1, 64>}, {pipeline_mode = #tpu.pipeline_mode<synchronous>, transform_indices = @transform_4, window_bounds = array<i64: 64, 3>}, {transform_indices = @transform_5, window_bounds = array<i64: 1, 128>}]} {
    %c0 = arith.constant 0 : index
    %c0_0 = arith.constant 0 : index
    %0 = vector.load %arg5[%c0, %c0_0] : memref<64x3xf32, #tpu.memory_space<vmem>>, vector<64x1xf32>
    %c0_1 = arith.constant 0 : index
    %c1 = arith.constant 1 : index
    %1 = vector.load %arg5[%c0_1, %c1] : memref<64x3xf32, #tpu.memory_space<vmem>>, vector<64x1xf32>
    %c0_2 = arith.constant 0 : index
    %c2 = arith.constant 2 : index
    %2 = vector.load %arg5[%c0_2, %c2] : memref<64x3xf32, #tpu.memory_space<vmem>>, vector<1x1xf32>
    %c0_3 = arith.constant 0 : index
    %c0_4 = arith.constant 0 : index
    %3 = vector.load %arg1[%c0_3, %c0_4] : memref<128x10xf32, #tpu.memory_space<vmem>>, vector<128x10xf32>
    %4 = tpu.transpose %3, [1, 0] : vector<128x10xf32> -> vector<10x128xf32>
    %c0_5 = arith.constant 0 : index
    %c0_6 = arith.constant 0 : index
    %5 = vector.load %arg2[%c0_5, %c0_6] : memref<64x10xf32, #tpu.memory_space<vmem>>, vector<64x10xf32>
    %cst = arith.constant dense<0.000000e+00> : vector<64x128xf32>
    %6 = tpu.matmul %5, %4, %cst {dimension_numbers = #tpu.dot_dimension_numbers<[1], [0], [0], [1], [0, 0, 1, 1], [], []>, precision = #tpu.contract_precision<fp32>} : vector<64x10xf32>, vector<10x128xf32>, vector<64x128xf32> -> vector<64x128xf32>
    %7 = vector.broadcast %0 : vector<64x1xf32> to vector<64x128xf32>
    %8 = arith.addf %6, %7 : vector<64x128xf32>
    %cst_7 = arith.constant 0.000000e+00 : f32
    %9 = vector.broadcast %cst_7 : f32 to vector<64x128xf32>
    %10 = arith.maximumf %8, %9 : vector<64x128xf32>
    %c0_8 = arith.constant 0 : index
    %c0_9 = arith.constant 0 : index
    %11 = vector.load %arg3[%c0_8, %c0_9] : memref<64x64xf32, #tpu.memory_space<vmem>>, vector<64x64xf32>
    %cst_10 = arith.constant dense<0.000000e+00> : vector<64x128xf32>
    %12 = tpu.matmul %11, %10, %cst_10 {dimension_numbers = #tpu.dot_dimension_numbers<[1], [0], [0], [1], [0, 0, 1, 1], [], []>, precision = #tpu.contract_precision<fp32>} : vector<64x64xf32>, vector<64x128xf32>, vector<64x128xf32> -> vector<64x128xf32>
    %13 = vector.broadcast %1 : vector<64x1xf32> to vector<64x128xf32>
    %14 = arith.addf %12, %13 : vector<64x128xf32>
    %cst_11 = arith.constant 0.000000e+00 : f32
    %15 = vector.broadcast %cst_11 : f32 to vector<64x128xf32>
    %16 = arith.maximumf %14, %15 : vector<64x128xf32>
    %c0_12 = arith.constant 0 : index
    %c0_13 = arith.constant 0 : index
    %17 = vector.load %arg4[%c0_12, %c0_13] : memref<1x64xf32, #tpu.memory_space<vmem>>, vector<1x64xf32>
    %cst_14 = arith.constant dense<0.000000e+00> : vector<1x128xf32>
    %18 = tpu.matmul %17, %16, %cst_14 {dimension_numbers = #tpu.dot_dimension_numbers<[1], [0], [0], [1], [0, 0, 1, 1], [], []>, precision = #tpu.contract_precision<fp32>} : vector<1x64xf32>, vector<64x128xf32>, vector<1x128xf32> -> vector<1x128xf32>
    %19 = vector.broadcast %2 : vector<1x1xf32> to vector<1x128xf32>
    %20 = arith.addf %18, %19 : vector<1x128xf32>
    %c0_15 = arith.constant 0 : index
    %c0_16 = arith.constant 0 : index
    %21 = vector.load %arg6[%c0_15, %c0_16] : memref<1x128xf32, #tpu.memory_space<vmem>>, vector<1x128xf32>
    tpu.vector_store %arg6[%c0_15, %c0_16], %20 {strides = array<i32>} : memref<1x128xf32, #tpu.memory_space<vmem>>, vector<1x128xf32>,
    return
  }
  func.func @transform_0(%arg0: i32) -> (i32, i32) {
    %c0_i32 = arith.constant 0 : i32
    %c0_i32_0 = arith.constant 0 : i32
    return %arg0, %c0_i32 : i32, i32
  }
  func.func @transform_1(%arg0: i32) -> (i32, i32) {
    %c0_i32 = arith.constant 0 : i32
    %c0_i32_0 = arith.constant 0 : i32
    %c0_i32_1 = arith.constant 0 : i32
    return %c0_i32, %c0_i32_0 : i32, i32
  }
  func.func @transform_2(%arg0: i32) -> (i32, i32) {
    %c0_i32 = arith.constant 0 : i32
    %c0_i32_0 = arith.constant 0 : i32
    %c0_i32_1 = arith.constant 0 : i32
    return %c0_i32, %c0_i32_0 : i32, i32
  }
  func.func @transform_3(%arg0: i32) -> (i32, i32) {
    %c0_i32 = arith.constant 0 : i32
    %c0_i32_0 = arith.constant 0 : i32
    %c0_i32_1 = arith.constant 0 : i32
    return %c0_i32, %c0_i32_0 : i32, i32
  }
  func.func @transform_4(%arg0: i32) -> (i32, i32) {
    %c0_i32 = arith.constant 0 : i32
    %c0_i32_0 = arith.constant 0 : i32
    %c0_i32_1 = arith.constant 0 : i32
    return %c0_i32, %c0_i32_0 : i32, i32
  }
  func.func @transform_5(%arg0: i32) -> (i32, i32) {
    %c0_i32 = arith.constant 0 : i32
    %c0_i32_0 = arith.constant 0 : i32
    return %c0_i32, %arg0 : i32, i32
  }
}

</mosaic_0001>

<llo_original>
// kernel: net_forward.1
$region0: #{net_forward.1}
  #allocation0 [shape = 'u32[]', space=smem, size = 0x4, offset = 0x4, fixed_abs, tag = 'smem constant byte address 0x4 - core index']
  #allocation1 [shape = 'u32[144,128]{1,0:T(1,128)}', space=vmem, size = 0x12000, scoped, tag = 'internal scratch']
  %s0 = inlined_call_operand.vmem [shape: f32[8,10], index: 0, kind: input, shape index: {}]
  %s1 = inlined_call_operand.vmem [shape: f32[64,10], index: 1, kind: input, shape index: {}]
  %s2 = inlined_call_operand.vmem [shape: f32[64,64], index: 2, kind: input, shape index: {}]
  %s3 = inlined_call_operand.vmem [shape: f32[1,64], index: 3, kind: input, shape index: {}]
  %s4 = inlined_call_operand.vmem [shape: f32[64,3], index: 4, kind: input, shape index: {}]
  %s5 = inlined_call_operand.vmem [shape: f32[1,128], index: 5, kind: output, shape index: {}]
  %s6 = sld [smem:[#allocation0]]
  $region30: #{net_forward.1} parent=0
    _
  %s8 = ssub.s32 1, %s6
  %s9 = scalar_select 0, %s8, %s6
  // Predicated region
  $region2: #{net_forward.1} parent=0 // pred_check
    _
  $region3: #{net_forward.1} parent=0 // pred_check_branch
    %11 = sbr.rel (0) target = $region5
  $region4: #{net_forward.1} parent=0 // pred_region
    _
  $region5: #{net_forward.1} parent=0 // pred_fallthru
    _
  // Predicated region
  $region6: #{net_forward.1} parent=0 // pred_check
    _
  $region7: #{net_forward.1} parent=0 // pred_check_branch
    %13 = sbr.rel (0) target = $region9
  $region8: #{net_forward.1} parent=0 // pred_region
    _
  $region9: #{net_forward.1} parent=0 // pred_fallthru
    _
  // Predicated region
  $region10: #{net_forward.1} parent=0 // pred_check
    _
  $region11: #{net_forward.1} parent=0 // pred_check_branch
    %15 = sbr.rel (0) target = $region13
  $region12: #{net_forward.1} parent=0 // pred_region
    _
  $region13: #{net_forward.1} parent=0 // pred_fallthru
    _
  // Predicated region
  $region14: #{net_forward.1} parent=0 // pred_check
    _
  $region15: #{net_forward.1} parent=0 // pred_check_branch
    %17 = sbr.rel (0) target = $region17
  $region16: #{net_forward.1} parent=0 // pred_region
    _
  $region17: #{net_forward.1} parent=0 // pred_fallthru
    _
  // Predicated region
  $region18: #{net_forward.1} parent=0 // pred_check
    _
  $region19: #{net_forward.1} parent=0 // pred_check_branch
    %19 = sbr.rel (0) target = $region21
  $region20: #{net_forward.1} parent=0 // pred_region
    _
  $region21: #{net_forward.1} parent=0 // pred_fallthru
    _
  %v20 = vld [vmem:[%s4] sm:$0xff]
  %v21 = vld [vmem:[%s4 + $0x8] sm:$0xff]
  %v22 = vld [vmem:[%s4 + $0x10] sm:$0xff]
  %v23 = vld [vmem:[%s4 + $0x18] sm:$0xff]
  %v24 = vld [vmem:[%s4 + $0x20] sm:$0xff]
  %v25 = vld [vmem:[%s4 + $0x28] sm:$0xff]
  %v26 = vld [vmem:[%s4 + $0x30] sm:$0xff]
  %v27 = vld [vmem:[%s4 + $0x38] sm:$0xff]
  %v28 = vld [vmem:[%s4] sm:$0x1]
  %v29 = vld [vmem:[%s0] sm:$0xff]
  %v30 = vld [vmem:[%s0 + $0x8] sm:$0xff]
  %v31 = vld [vmem:[%s0 + $0x10] sm:$0xff]
  %v32 = vld [vmem:[%s0 + $0x18] sm:$0xff]
  %v33 = vld [vmem:[%s0 + $0x20] sm:$0xff]
  %v34 = vld [vmem:[%s0 + $0x28] sm:$0xff]
  %v35 = vld [vmem:[%s0 + $0x30] sm:$0xff]
  %v36 = vld [vmem:[%s0 + $0x38] sm:$0xff]
  %v37 = vld [vmem:[%s0 + $0x40] sm:$0xff]
  %v38 = vld [vmem:[%s0 + $0x48] sm:$0xff]
  %v39 = vld [vmem:[%s0 + $0x50] sm:$0xff]
  %v40 = vld [vmem:[%s0 + $0x58] sm:$0xff]
  %v41 = vld [vmem:[%s0 + $0x60] sm:$0xff]
  %v42 = vld [vmem:[%s0 + $0x68] sm:$0xff]
  %v43 = vld [vmem:[%s0 + $0x70] sm:$0xff]
  %v44 = vld [vmem:[%s0 + $0x78] sm:$0xff]
  %v45 = vld [vmem:[%s1] sm:$0xff]
  %v46 = vld [vmem:[%s1 + $0x8] sm:$0xff]
  %v47 = vld [vmem:[%s1 + $0x10] sm:$0xff]
  %v48 = vld [vmem:[%s1 + $0x18] sm:$0xff]
  %v49 = vld [vmem:[%s1 + $0x20] sm:$0xff]
  %v50 = vld [vmem:[%s1 + $0x28] sm:$0xff]
  %v51 = vld [vmem:[%s1 + $0x30] sm:$0xff]
  %v52 = vld [vmem:[%s1 + $0x38] sm:$0xff]
  %54 = vset.pattern.permute.xlu0 0
  %55 = vperm.xlu0 %54, %v20
  %v56 = vpop.permute.xlu0 %55
  %59 = vset.pattern.permute.xlu0 0
  %60 = vperm.xlu0 %59, %v21
  %v61 = vpop.permute.xlu0 %60
  %64 = vset.pattern.permute.xlu0 0
  %65 = vperm.xlu0 %64, %v22
  %v66 = vpop.permute.xlu0 %65
  %69 = vset.pattern.permute.xlu0 0
  %70 = vperm.xlu0 %69, %v23
  %v71 = vpop.permute.xlu0 %70
  %74 = vset.pattern.permute.xlu0 0
  %75 = vperm.xlu0 %74, %v24
  %v76 = vpop.permute.xlu0 %75
  %79 = vset.pattern.permute.xlu0 0
  %80 = vperm.xlu0 %79, %v25
  %v81 = vpop.permute.xlu0 %80
  %84 = vset.pattern.permute.xlu0 0
  %85 = vperm.xlu0 %84, %v26
  %v86 = vpop.permute.xlu0 %85
  %89 = vset.pattern.permute.xlu0 0
  %90 = vperm.xlu0 %89, %v27
  %v91 = vpop.permute.xlu0 %90
  %vm93 = vcmask 80896
  %v95 = vsel %vm93, %v45, 0
  %v98 = vsel %vm93, %v46, 0
  %v101 = vsel %vm93, %v47, 0
  %v104 = vsel %vm93, %v48, 0
  %v107 = vsel %vm93, %v49, 0
  %v110 = vsel %vm93, %v50, 0
  %v113 = vsel %vm93, %v51, 0
  %v116 = vsel %vm93, %v52, 0
  %v119 = vsel %vm93, %v29, 0
  %v122 = vsel %vm93, %v30, 0
  %v125 = vsel %vm93, %v31, 0
  %v128 = vsel %vm93, %v32, 0
  %v131 = vsel %vm93, %v33, 0
  %v134 = vsel %vm93, %v34, 0
  %v137 = vsel %vm93, %v35, 0
  %v140 = vsel %vm93, %v36, 0
  %v143 = vsel %vm93, %v37, 0
  %v146 = vsel %vm93, %v38, 0
  %v149 = vsel %vm93, %v39, 0
  %v152 = vsel %vm93, %v40, 0
  %v155 = vsel %vm93, %v41, 0
  %v158 = vsel %vm93, %v42, 0
  %v161 = vsel %vm93, %v43, 0
  %v164 = vsel %vm93, %v44, 0
  %166 = vmatprep.subr.mxu0 0.0
  %v167 = vand.u32 %v119, 4294901760
  %168 = vmatpush1.xpose.msra.mxu0 %v167
  %169 = vmatprep.subr.mxu0 0.0
  %v170 = vand.u32 %v122, 4294901760
  %171 = vmatpush1.xpose.msra.mxu0 %v170
  %172 = vmatprep.subr.mxu0 0.0
  %v173 = vand.u32 %v125, 4294901760
  %174 = vmatpush1.xpose.msra.mxu0 %v173
  %175 = vmatprep.subr.mxu0 0.0
  %v176 = vand.u32 %v128, 4294901760
  %177 = vmatpush1.xpose.msra.mxu0 %v176
  %178 = vmatprep.subr.mxu0 0.0
  %v179 = vand.u32 %v131, 4294901760
  %180 = vmatpush1.xpose.msra.mxu0 %v179
  %181 = vmatprep.subr.mxu0 0.0
  %v182 = vand.u32 %v134, 4294901760
  %183 = vmatpush1.xpose.msra.mxu0 %v182
  %184 = vmatprep.subr.mxu0 0.0
  %v185 = vand.u32 %v137, 4294901760
  %186 = vmatpush1.xpose.msra.mxu0 %v185
  %187 = vmatprep.subr.mxu0 0.0
  %v188 = vand.u32 %v140, 4294901760
  %189 = vmatpush1.xpose.msra.mxu0 %v188
  %190 = vmatprep.subr.mxu0 0.0
  %v191 = vand.u32 %v143, 4294901760
  %192 = vmatpush1.xpose.msra.mxu0 %v191
  %193 = vmatprep.subr.mxu0 0.0
  %v194 = vand.u32 %v146, 4294901760
  %195 = vmatpush1.xpose.msra.mxu0 %v194
  %196 = vmatprep.subr.mxu0 0.0
  %v197 = vand.u32 %v149, 4294901760
  %198 = vmatpush1.xpose.msra.mxu0 %v197
  %199 = vmatprep.subr.mxu0 0.0
  %v200 = vand.u32 %v152, 4294901760
  %201 = vmatpush1.xpose.msra.mxu0 %v200
  %202 = vmatprep.subr.mxu0 0.0
  %v203 = vand.u32 %v155, 4294901760
  %204 = vmatpush1.xpose.msra.mxu0 %v203
  %205 = vmatprep.subr.mxu0 0.0
  %v206 = vand.u32 %v158, 4294901760
  %207 = vmatpush1.xpose.msra.mxu0 %v206
  %208 = vmatprep.subr.mxu0 0.0
  %v209 = vand.u32 %v161, 4294901760
  %210 = vmatpush1.xpose.msra.mxu0 %v209
  %211 = vmatprep.subr.mxu0 0.0
  %v212 = vand.u32 %v164, 4294901760
  %213 = vmatpush1.xpose.msra.mxu0 %v212
  %214 = vmatprep.subr.mxu0 0.0
  %215 = vmatpush1.xpose.msra.mxu0 0.0
  %216 = vmatprep.subr.mxu0 0.0
  %217 = vmatpush1.xpose.msra.mxu0 0.0
  %218 = vmatprep.subr.mxu0 0.0
  %219 = vmatpush1.xpose.msra.mxu0 0.0
  %220 = vmatprep.subr.mxu0 0.0
  %221 = vmatpush1.xpose.msra.mxu0 0.0
  %222 = vmatprep.subr.mxu0 0.0
  %223 = vmatpush1.xpose.msra.mxu0 0.0
  %224 = vmatprep.subr.mxu0 0.0
  %225 = vmatpush1.xpose.msra.mxu0 0.0
  %226 = vmatprep.subr.mxu0 0.0
  %227 = vmatpush1.xpose.msra.mxu0 0.0
  %228 = vmatprep.subr.mxu0 0.0
  %229 = vmatpush1.xpose.msra.mxu0 0.0
  %230 = vmatprep.subr.mxu0 0.0
  %231 = vmatpush1.xpose.msra.mxu0 0.0
  %232 = vmatprep.subr.mxu0 0.0
  %233 = vmatpush1.xpose.msra.mxu0 0.0
  %234 = vmatprep.subr.mxu0 0.0
  %235 = vmatpush1.xpose.msra.mxu0 0.0
  %236 = vmatprep.subr.mxu0 0.0
  %237 = vmatpush1.xpose.msra.mxu0 0.0
  %238 = vmatprep.subr.mxu0 0.0
  %239 = vmatpush1.xpose.msra.mxu0 0.0
  %240 = vmatprep.subr.mxu0 0.0
  %241 = vmatpush1.xpose.msra.mxu0 0.0
  %242 = vmatprep.subr.mxu0 0.0
  %243 = vmatpush1.xpose.msra.mxu0 0.0
  %244 = vmatprep.subr.mxu0 0.0
  %245 = vmatpush1.xpose.msra.mxu0 0.0
  %246 = vmatprep.mubr.f32.mxu0 0.0
  %v247 = vand.u32 %v95, 4294901760
  %v248 = vsub.f32 %v95, %v247
  %v249 = vand.u32 %v248, 4294901760
  %v250 = vsub.f32 %v248, %v249
  %v251 = vand.u32 %v250, 4294901760
  %252 = vmatmul.mubr.f32.gmra.mrb[0].mxu0 %v251
  %v253 = vpop.f32.mrb[0].mxu0
  %v254 = vadd.f32 %v56, %v253
  %v255 = vpop.f32.mrb[0].mxu0
  %256 = vmatprep.mubr.f32.mxu0 0.0
  %v257 = vand.u32 %v98, 4294901760
  %v258 = vsub.f32 %v98, %v257
  %v259 = vand.u32 %v258, 4294901760
  %v260 = vsub.f32 %v258, %v259
  %v261 = vand.u32 %v260, 4294901760
  %262 = vmatmul.mubr.f32.gmra.mrb[0].mxu0 %v261
  %v263 = vpop.f32.mrb[0].mxu0
  %v264 = vadd.f32 %v61, %v263
  %v265 = vpop.f32.mrb[0].mxu0
  %266 = vmatprep.mubr.f32.mxu0 0.0
  %v267 = vand.u32 %v101, 4294901760
  %v268 = vsub.f32 %v101, %v267
  %v269 = vand.u32 %v268, 4294901760
  %v270 = vsub.f32 %v268, %v269
  %v271 = vand.u32 %v270, 4294901760
  %272 = vmatmul.mubr.f32.gmra.mrb[0].mxu0 %v271
  %v273 = vpop.f32.mrb[0].mxu0
  %v274 = vadd.f32 %v66, %v273
  %v275 = vpop.f32.mrb[0].mxu0
  %276 = vmatprep.mubr.f32.mxu0 0.0
  %v277 = vand.u32 %v104, 4294901760
  %v278 = vsub.f32 %v104, %v277
  %v279 = vand.u32 %v278, 4294901760
  %v280 = vsub.f32 %v278, %v279
  %v281 = vand.u32 %v280, 4294901760
  %282 = vmatmul.mubr.f32.gmra.mrb[0].mxu0 %v281
  %v283 = vpop.f32.mrb[0].mxu0
  %v284 = vadd.f32 %v71, %v283
  %v285 = vpop.f32.mrb[0].mxu0
  %286 = vmatprep.mubr.f32.mxu0 0.0
  %v287 = vand.u32 %v107, 4294901760
  %v288 = vsub.f32 %v107, %v287
  %v289 = vand.u32 %v288, 4294901760
  %v290 = vsub.f32 %v288, %v289
  %v291 = vand.u32 %v290, 4294901760
  %292 = vmatmul.mubr.f32.gmra.mrb[0].mxu0 %v291
  %v293 = vpop.f32.mrb[0].mxu0
  %v294 = vadd.f32 %v76, %v293
  %v295 = vpop.f32.mrb[0].mxu0
  %296 = vmatprep.mubr.f32.mxu0 0.0
  %v297 = vand.u32 %v110, 4294901760
  %v298 = vsub.f32 %v110, %v297
  %v299 = vand.u32 %v298, 4294901760
  %v300 = vsub.f32 %v298, %v299
  %v301 = vand.u32 %v300, 4294901760
  %302 = vmatmul.mubr.f32.gmra.mrb[0].mxu0 %v301
  %v303 = vpop.f32.mrb[0].mxu0
  %v304 = vadd.f32 %v81, %v303
  %v305 = vpop.f32.mrb[0].mxu0
  %306 = vmatprep.mubr.f32.mxu0 0.0
  %v307 = vand.u32 %v113, 4294901760
  %v308 = vsub.f32 %v113, %v307
  %v309 = vand.u32 %v308, 4294901760
  %v310 = vsub.f32 %v308, %v309
  %v311 = vand.u32 %v310, 4294901760
  %312 = vmatmul.mubr.f32.gmra.mrb[0].mxu0 %v311
  %v313 = vpop.f32.mrb[0].mxu0
  %v314 = vadd.f32 %v86, %v313
  %v315 = vpop.f32.mrb[0].mxu0
  %316 = vmatprep.mubr.f32.mxu0 0.0
  %v317 = vand.u32 %v116, 4294901760
  %v318 = vsub.f32 %v116, %v317
  %v319 = vand.u32 %v318, 4294901760
  %v320 = vsub.f32 %v318, %v319
  %v321 = vand.u32 %v320, 4294901760
  %322 = vmatmul.mubr.f32.gmra.mrb[0].mxu0 %v321
  %v323 = vpop.f32.mrb[0].mxu0
  %v324 = vadd.f32 %v91, %v323
  %v325 = vpop.f32.mrb[0].mxu0
  %326 = vdwg.mxu0
  %327 = vmatprep.subr.mxu0 0.0
  %v328 = vand.u32 %v119, 4294901760
  %v329 = vsub.f32 %v119, %v328
  %v330 = vand.u32 %v329, 4294901760
  %v331 = vsub.f32 %v329, %v330
  %v332 = vand.u32 %v331, 4294901760
  %333 = vmatpush1.xpose.msra.mxu0 %v332
  %334 = vmatprep.subr.mxu0 0.0
  %v335 = vand.u32 %v122, 4294901760
  %v336 = vsub.f32 %v122, %v335
  %v337 = vand.u32 %v336, 4294901760
  %v338 = vsub.f32 %v336, %v337
  %v339 = vand.u32 %v338, 4294901760
  %340 = vmatpush1.xpose.msra.mxu0 %v339
  %341 = vmatprep.subr.mxu0 0.0
  %v342 = vand.u32 %v125, 4294901760
  %v343 = vsub.f32 %v125, %v342
  %v344 = vand.u32 %v343, 4294901760
  %v345 = vsub.f32 %v343, %v344
  %v346 = vand.u32 %v345, 4294901760
  %347 = vmatpush1.xpose.msra.mxu0 %v346
  %348 = vmatprep.subr.mxu0 0.0
  %v349 = vand.u32 %v128, 4294901760
  %v350 = vsub.f32 %v128, %v349
  %v351 = vand.u32 %v350, 4294901760
  %v352 = vsub.f32 %v350, %v351
  %v353 = vand.u32 %v352, 4294901760
  %354 = vmatpush1.xpose.msra.mxu0 %v353
  %355 = vmatprep.subr.mxu0 0.0
  %v356 = vand.u32 %v131, 4294901760
  %v357 = vsub.f32 %v131, %v356
  %v358 = vand.u32 %v357, 4294901760
  %v359 = vsub.f32 %v357, %v358
  %v360 = vand.u32 %v359, 4294901760
  %361 = vmatpush1.xpose.msra.mxu0 %v360
  %362 = vmatprep.subr.mxu0 0.0
  %v363 = vand.u32 %v134, 4294901760
  %v364 = vsub.f32 %v134, %v363
  %v365 = vand.u32 %v364, 4294901760
  %v366 = vsub.f32 %v364, %v365
  %v367 = vand.u32 %v366, 4294901760
  %368 = vmatpush1.xpose.msra.mxu0 %v367
  %369 = vmatprep.subr.mxu0 0.0
  %v370 = vand.u32 %v137, 4294901760
  %v371 = vsub.f32 %v137, %v370
  %v372 = vand.u32 %v371, 4294901760
  %v373 = vsub.f32 %v371, %v372
  %v374 = vand.u32 %v373, 4294901760
  %375 = vmatpush1.xpose.msra.mxu0 %v374
  %376 = vmatprep.subr.mxu0 0.0
  %v377 = vand.u32 %v140, 4294901760
  %v378 = vsub.f32 %v140, %v377
  %v379 = vand.u32 %v378, 4294901760
  %v380 = vsub.f32 %v378, %v379
  %v381 = vand.u32 %v380, 4294901760
  %382 = vmatpush1.xpose.msra.mxu0 %v381
  %383 = vmatprep.subr.mxu0 0.0
  %v384 = vand.u32 %v143, 4294901760
  %v385 = vsub.f32 %v143, %v384
  %v386 = vand.u32 %v385, 4294901760
  %v387 = vsub.f32 %v385, %v386
  %v388 = vand.u32 %v387, 4294901760
  %389 = vmatpush1.xpose.msra.mxu0 %v388
  %390 = vmatprep.subr.mxu0 0.0
  %v391 = vand.u32 %v146, 4294901760
  %v392 = vsub.f32 %v146, %v391
  %v393 = vand.u32 %v392, 4294901760
  %v394 = vsub.f32 %v392, %v393
  %v395 = vand.u32 %v394, 4294901760
  %396 = vmatpush1.xpose.msra.mxu0 %v395
  %397 = vmatprep.subr.mxu0 0.0
  %v398 = vand.u32 %v149, 4294901760
  %v399 = vsub.f32 %v149, %v398
  %v400 = vand.u32 %v399, 4294901760
  %v401 = vsub.f32 %v399, %v400
  %v402 = vand.u32 %v401, 4294901760
  %403 = vmatpush1.xpose.msra.mxu0 %v402
  %404 = vmatprep.subr.mxu0 0.0
  %v405 = vand.u32 %v152, 4294901760
  %v406 = vsub.f32 %v152, %v405
  %v407 = vand.u32 %v406, 4294901760
  %v408 = vsub.f32 %v406, %v407
  %v409 = vand.u32 %v408, 4294901760
  %410 = vmatpush1.xpose.msra.mxu0 %v409
  %411 = vmatprep.subr.mxu0 0.0
  %v412 = vand.u32 %v155, 4294901760
  %v413 = vsub.f32 %v155, %v412
  %v414 = vand.u32 %v413, 4294901760
  %v415 = vsub.f32 %v413, %v414
  %v416 = vand.u32 %v415, 4294901760
  %417 = vmatpush1.xpose.msra.mxu0 %v416
  %418 = vmatprep.subr.mxu0 0.0
  %v419 = vand.u32 %v158, 4294901760
  %v420 = vsub.f32 %v158, %v419
  %v421 = vand.u32 %v420, 4294901760
  %v422 = vsub.f32 %v420, %v421
  %v423 = vand.u32 %v422, 4294901760
  %424 = vmatpush1.xpose.msra.mxu0 %v423
  %425 = vmatprep.subr.mxu0 0.0
  %v426 = vand.u32 %v161, 4294901760
  %v427 = vsub.f32 %v161, %v426
  %v428 = vand.u32 %v427, 4294901760
  %v429 = vsub.f32 %v427, %v428
  %v430 = vand.u32 %v429, 4294901760
  %431 = vmatpush1.xpose.msra.mxu0 %v430
  %432 = vmatprep.subr.mxu0 0.0
  %v433 = vand.u32 %v164, 4294901760
  %v434 = vsub.f32 %v164, %v433
  %v435 = vand.u32 %v434, 4294901760
  %v436 = vsub.f32 %v434, %v435
  %v437 = vand.u32 %v436, 4294901760
  %438 = vmatpush1.xpose.msra.mxu0 %v437
  %439 = vmatprep.subr.mxu0 0.0
  %440 = vmatpush1.xpose.msra.mxu0 0.0
  %441 = vmatprep.subr.mxu0 0.0
  %442 = vmatpush1.xpose.msra.mxu0 0.0
  %443 = vmatprep.subr.mxu0 0.0
  %444 = vmatpush1.xpose.msra.mxu0 0.0
  %445 = vmatprep.subr.mxu0 0.0
  %446 = vmatpush1.xpose.msra.mxu0 0.0
  %447 = vmatprep.subr.mxu0 0.0
  %448 = vmatpush1.xpose.msra.mxu0 0.0
  %449 = vmatprep.subr.mxu0 0.0
  %450 = vmatpush1.xpose.msra.mxu0 0.0
  %451 = vmatprep.subr.mxu0 0.0
  %452 = vmatpush1.xpose.msra.mxu0 0.0
  %453 = vmatprep.subr.mxu0 0.0
  %454 = vmatpush1.xpose.msra.mxu0 0.0
  %455 = vmatprep.subr.mxu0 0.0
  %456 = vmatpush1.xpose.msra.mxu0 0.0
  %457 = vmatprep.subr.mxu0 0.0
  %458 = vmatpush1.xpose.msra.mxu0 0.0
  %459 = vmatprep.subr.mxu0 0.0
  %460 = vmatpush1.xpose.msra.mxu0 0.0
  %461 = vmatprep.subr.mxu0 0.0
  %462 = vmatpush1.xpose.msra.mxu0 0.0
  %463 = vmatprep.subr.mxu0 0.0
  %464 = vmatpush1.xpose.msra.mxu0 0.0
  %465 = vmatprep.subr.mxu0 0.0
  %466 = vmatpush1.xpose.msra.mxu0 0.0
  %467 = vmatprep.subr.mxu0 0.0
  %468 = vmatpush1.xpose.msra.mxu0 0.0
  %469 = vmatprep.subr.mxu0 0.0
  %470 = vmatpush1.xpose.msra.mxu0 0.0
  %471 = vmatprep.mubr.f32.mxu0 0.0
  %v472 = vand.u32 %v95, 4294901760
  %473 = vmatmul.mubr.f32.gmra.mrb[0].mxu0 %v472
  %v474 = vpop.f32.mrb[0].mxu0
  %v475 = vadd.f32 %v254, %v474
  %v476 = vpop.f32.mrb[0].mxu0
  %477 = vmatprep.mubr.f32.mxu0 0.0
  %v478 = vand.u32 %v98, 4294901760
  %479 = vmatmul.mubr.f32.gmra.mrb[0].mxu0 %v478
  %v480 = vpop.f32.mrb[0].mxu0
  %v481 = vadd.f32 %v264, %v480
  %v482 = vpop.f32.mrb[0].mxu0
  %483 = vmatprep.mubr.f32.mxu0 0.0
  %v484 = vand.u32 %v101, 4294901760
  %485 = vmatmul.mubr.f32.gmra.mrb[0].mxu0 %v484
  %v486 = vpop.f32.mrb[0].mxu0
  %v487 = vadd.f32 %v274, %v486
  %v488 = vpop.f32.mrb[0].mxu0
  %489 = vmatprep.mubr.f32.mxu0 0.0
  %v490 = vand.u32 %v104, 4294901760
  %491 = vmatmul.mubr.f32.gmra.mrb[0].mxu0 %v490
  %v492 = vpop.f32.mrb[0].mxu0
  %v493 = vadd.f32 %v284, %v492
  %v494 = vpop.f32.mrb[0].mxu0
  %495 = vmatprep.mubr.f32.mxu0 0.0
  %v496 = vand.u32 %v107, 4294901760
  %497 = vmatmul.mubr.f32.gmra.mrb[0].mxu0 %v496
  %v498 = vpop.f32.mrb[0].mxu0
  %v499 = vadd.f32 %v294, %v498
  %v500 = vpop.f32.mrb[0].mxu0
  %501 = vmatprep.mubr.f32.mxu0 0.0
  %v502 = vand.u32 %v110, 4294901760
  %503 = vmatmul.mubr.f32.gmra.mrb[0].mxu0 %v502
  %v504 = vpop.f32.mrb[0].mxu0
  %v505 = vadd.f32 %v304, %v504
  %v506 = vpop.f32.mrb[0].mxu0
  %507 = vmatprep.mubr.f32.mxu0 0.0
  %v508 = vand.u32 %v113, 4294901760
  %509 = vmatmul.mubr.f32.gmra.mrb[0].mxu0 %v508
  %v510 = vpop.f32.mrb[0].mxu0
  %v511 = vadd.f32 %v314, %v510
  %v512 = vpop.f32.mrb[0].mxu0
  %513 = vmatprep.mubr.f32.mxu0 0.0
  %v514 = vand.u32 %v116, 4294901760
  %515 = vmatmul.mubr.f32.gmra.mrb[0].mxu0 %v514
  %v516 = vpop.f32.mrb[0].mxu0
  %v517 = vadd.f32 %v324, %v516
  %v518 = vpop.f32.mrb[0].mxu0
  %519 = vdwg.mxu0
  %520 = vmatprep.subr.mxu0 0.0
  %v521 = vand.u32 %v119, 4294901760
  %v522 = vsub.f32 %v119, %v521
  %523 = vmatpush1.xpose.msra.mxu0 %v522
  %524 = vmatprep.subr.mxu0 0.0
  %v525 = vand.u32 %v122, 4294901760
  %v526 = vsub.f32 %v122, %v525
  %527 = vmatpush1.xpose.msra.mxu0 %v526
  %528 = vmatprep.subr.mxu0 0.0
  %v529 = vand.u32 %v125, 4294901760
  %v530 = vsub.f32 %v125, %v529
  %531 = vmatpush1.xpose.msra.mxu0 %v530
  %532 = vmatprep.subr.mxu0 0.0
  %v533 = vand.u32 %v128, 4294901760
  %v534 = vsub.f32 %v128, %v533
  %535 = vmatpush1.xpose.msra.mxu0 %v534
  %536 = vmatprep.subr.mxu0 0.0
  %v537 = vand.u32 %v131, 4294901760
  %v538 = vsub.f32 %v131, %v537
  %539 = vmatpush1.xpose.msra.mxu0 %v538
  %540 = vmatprep.subr.mxu0 0.0
  %v541 = vand.u32 %v134, 4294901760
  %v542 = vsub.f32 %v134, %v541
  %543 = vmatpush1.xpose.msra.mxu0 %v542
  %544 = vmatprep.subr.mxu0 0.0
  %v545 = vand.u32 %v137, 4294901760
  %v546 = vsub.f32 %v137, %v545
  %547 = vmatpush1.xpose.msra.mxu0 %v546
  %548 = vmatprep.subr.mxu0 0.0
  %v549 = vand.u32 %v140, 4294901760
  %v550 = vsub.f32 %v140, %v549
  %551 = vmatpush1.xpose.msra.mxu0 %v550
  %552 = vmatprep.subr.mxu0 0.0
  %v553 = vand.u32 %v143, 4294901760
  %v554 = vsub.f32 %v143, %v553
  %555 = vmatpush1.xpose.msra.mxu0 %v554
  %556 = vmatprep.subr.mxu0 0.0
  %v557 = vand.u32 %v146, 4294901760
  %v558 = vsub.f32 %v146, %v557
  %559 = vmatpush1.xpose.msra.mxu0 %v558
  %560 = vmatprep.subr.mxu0 0.0
  %v561 = vand.u32 %v149, 4294901760
  %v562 = vsub.f32 %v149, %v561
  %563 = vmatpush1.xpose.msra.mxu0 %v562
  %564 = vmatprep.subr.mxu0 0.0
  %v565 = vand.u32 %v152, 4294901760
  %v566 = vsub.f32 %v152, %v565
  %567 = vmatpush1.xpose.msra.mxu0 %v566
  %568 = vmatprep.subr.mxu0 0.0
  %v569 = vand.u32 %v155, 4294901760
  %v570 = vsub.f32 %v155, %v569
  %571 = vmatpush1.xpose.msra.mxu0 %v570
  %572 = vmatprep.subr.mxu0 0.0
  %v573 = vand.u32 %v158, 4294901760
  %v574 = vsub.f32 %v158, %v573
  %575 = vmatpush1.xpose.msra.mxu0 %v574
  %576 = vmatprep.subr.mxu0 0.0
  %v577 = vand.u32 %v161, 4294901760
  %v578 = vsub.f32 %v161, %v577
  %579 = vmatpush1.xpose.msra.mxu0 %v578
  %580 = vmatprep.subr.mxu0 0.0
  %v581 = vand.u32 %v164, 4294901760
  %v582 = vsub.f32 %v164, %v581
  %583 = vmatpush1.xpose.msra.mxu0 %v582
  %584 = vmatprep.subr.mxu0 0.0
  %585 = vmatpush1.xpose.msra.mxu0 0.0
  %586 = vmatprep.subr.mxu0 0.0
  %587 = vmatpush1.xpose.msra.mxu0 0.0
  %588 = vmatprep.subr.mxu0 0.0
  %589 = vmatpush1.xpose.msra.mxu0 0.0
  %590 = vmatprep.subr.mxu0 0.0
  %591 = vmatpush1.xpose.msra.mxu0 0.0
  %592 = vmatprep.subr.mxu0 0.0
  %593 = vmatpush1.xpose.msra.mxu0 0.0
  %594 = vmatprep.subr.mxu0 0.0
  %595 = vmatpush1.xpose.msra.mxu0 0.0
  %596 = vmatprep.subr.mxu0 0.0
  %597 = vmatpush1.xpose.msra.mxu0 0.0
  %598 = vmatprep.subr.mxu0 0.0
  %599 = vmatpush1.xpose.msra.mxu0 0.0
  %600 = vmatprep.subr.mxu0 0.0
  %601 = vmatpush1.xpose.msra.mxu0 0.0
  %602 = vmatprep.subr.mxu0 0.0
  %603 = vmatpush1.xpose.msra.mxu0 0.0
  %604 = vmatprep.subr.mxu0 0.0
  %605 = vmatpush1.xpose.msra.mxu0 0.0
  %606 = vmatprep.subr.mxu0 0.0
  %607 = vmatpush1.xpose.msra.mxu0 0.0
  %608 = vmatprep.subr.mxu0 0.0
  %609 = vmatpush1.xpose.msra.mxu0 0.0
  %610 = vmatprep.subr.mxu0 0.0
  %611 = vmatpush1.xpose.msra.mxu0 0.0
  %612 = vmatprep.subr.mxu0 0.0
  %613 = vmatpush1.xpose.msra.mxu0 0.0
  %614 = vmatprep.subr.mxu0 0.0
  %615 = vmatpush1.xpose.msra.mxu0 0.0
  %616 = vmatprep.mubr.f32.mxu0 0.0
  %v617 = vand.u32 %v95, 4294901760
  %v618 = vsub.f32 %v95, %v617
  %619 = vmatmul.mubr.f32.gmra.mrb[0].mxu0 %v618
  %v620 = vpop.f32.mrb[0].mxu0
  %v621 = vadd.f32 %v475, %v620
  %v622 = vpop.f32.mrb[0].mxu0
  %623 = vmatprep.mubr.f32.mxu0 0.0
  %v624 = vand.u32 %v98, 4294901760
  %v625 = vsub.f32 %v98, %v624
  %626 = vmatmul.mubr.f32.gmra.mrb[0].mxu0 %v625
  %v627 = vpop.f32.mrb[0].mxu0
  %v628 = vadd.f32 %v481, %v627
  %v629 = vpop.f32.mrb[0].mxu0
  %630 = vmatprep.mubr.f32.mxu0 0.0
  %v631 = vand.u32 %v101, 4294901760
  %v632 = vsub.f32 %v101, %v631
  %633 = vmatmul.mubr.f32.gmra.mrb[0].mxu0 %v632
  %v634 = vpop.f32.mrb[0].mxu0
  %v635 = vadd.f32 %v487, %v634
  %v636 = vpop.f32.mrb[0].mxu0
  %637 = vmatprep.mubr.f32.mxu0 0.0
  %v638 = vand.u32 %v104, 4294901760
  %v639 = vsub.f32 %v104, %v638
  %640 = vmatmul.mubr.f32.gmra.mrb[0].mxu0 %v639
  %v641 = vpop.f32.mrb[0].mxu0
  %v642 = vadd.f32 %v493, %v641
  %v643 = vpop.f32.mrb[0].mxu0
  %644 = vmatprep.mubr.f32.mxu0 0.0
  %v645 = vand.u32 %v107, 4294901760
  %v646 = vsub.f32 %v107, %v645
  %647 = vmatmul.mubr.f32.gmra.mrb[0].mxu0 %v646
  %v648 = vpop.f32.mrb[0].mxu0
  %v649 = vadd.f32 %v499, %v648
  %v650 = vpop.f32.mrb[0].mxu0
  %651 = vmatprep.mubr.f32.mxu0 0.0
  %v652 = vand.u32 %v110, 4294901760
  %v653 = vsub.f32 %v110, %v652
  %654 = vmatmul.mubr.f32.gmra.mrb[0].mxu0 %v653
  %v655 = vpop.f32.mrb[0].mxu0
  %v656 = vadd.f32 %v505, %v655
  %v657 = vpop.f32.mrb[0].mxu0
  %658 = vmatprep.mubr.f32.mxu0 0.0
  %v659 = vand.u32 %v113, 4294901760
  %v660 = vsub.f32 %v113, %v659
  %661 = vmatmul.mubr.f32.gmra.mrb[0].mxu0 %v660
  %v662 = vpop.f32.mrb[0].mxu0
  %v663 = vadd.f32 %v511, %v662
  %v664 = vpop.f32.mrb[0].mxu0
  %665 = vmatprep.mubr.f32.mxu0 0.0
  %v666 = vand.u32 %v116, 4294901760
  %v667 = vsub.f32 %v116, %v666
  %668 = vmatmul.mubr.f32.gmra.mrb[0].mxu0 %v667
  %v669 = vpop.f32.mrb[0].mxu0
  %v670 = vadd.f32 %v517, %v669
  %v671 = vpop.f32.mrb[0].mxu0
  %672 = vdwg.mxu0
  %673 = vmatprep.subr.mxu0 0.0
  %v674 = vand.u32 %v119, 4294901760
  %675 = vmatpush1.xpose.msra.mxu0 %v674
  %676 = vmatprep.subr.mxu0 0.0
  %v677 = vand.u32 %v122, 4294901760
  %678 = vmatpush1.xpose.msra.mxu0 %v677
  %679 = vmatprep.subr.mxu0 0.0
  %v680 = vand.u32 %v125, 4294901760
  %681 = vmatpush1.xpose.msra.mxu0 %v680
  %682 = vmatprep.subr.mxu0 0.0
  %v683 = vand.u32 %v128, 4294901760
  %684 = vmatpush1.xpose.msra.mxu0 %v683
  %685 = vmatprep.subr.mxu0 0.0
  %v686 = vand.u32 %v131, 4294901760
  %687 = vmatpush1.xpose.msra.mxu0 %v686
  %688 = vmatprep.subr.mxu0 0.0
  %v689 = vand.u32 %v134, 4294901760
  %690 = vmatpush1.xpose.msra.mxu0 %v689
  %691 = vmatprep.subr.mxu0 0.0
  %v692 = vand.u32 %v137, 4294901760
  %693 = vmatpush1.xpose.msra.mxu0 %v692
  %694 = vmatprep.subr.mxu0 0.0
  %v695 = vand.u32 %v140, 4294901760
  %696 = vmatpush1.xpose.msra.mxu0 %v695
  %697 = vmatprep.subr.mxu0 0.0
  %v698 = vand.u32 %v143, 4294901760
  %699 = vmatpush1.xpose.msra.mxu0 %v698
  %700 = vmatprep.subr.mxu0 0.0
  %v701 = vand.u32 %v146, 4294901760
  %702 = vmatpush1.xpose.msra.mxu0 %v701
  %703 = vmatprep.subr.mxu0 0.0
  %v704 = vand.u32 %v149, 4294901760
  %705 = vmatpush1.xpose.msra.mxu0 %v704
  %706 = vmatprep.subr.mxu0 0.0
  %v707 = vand.u32 %v152, 4294901760
  %708 = vmatpush1.xpose.msra.mxu0 %v707
  %709 = vmatprep.subr.mxu0 0.0
  %v710 = vand.u32 %v155, 4294901760
  %711 = vmatpush1.xpose.msra.mxu0 %v710
  %712 = vmatprep.subr.mxu0 0.0
  %v713 = vand.u32 %v158, 4294901760
  %714 = vmatpush1.xpose.msra.mxu0 %v713
  %715 = vmatprep.subr.mxu0 0.0
  %v716 = vand.u32 %v161, 4294901760
  %717 = vmatpush1.xpose.msra.mxu0 %v716
  %718 = vmatprep.subr.mxu0 0.0
  %v719 = vand.u32 %v164, 4294901760
  %720 = vmatpush1.xpose.msra.mxu0 %v719
  %721 = vmatprep.subr.mxu0 0.0
  %722 = vmatpush1.xpose.msra.mxu0 0.0
  %723 = vmatprep.subr.mxu0 0.0
  %724 = vmatpush1.xpose.msra.mxu0 0.0
  %725 = vmatprep.subr.mxu0 0.0
  %726 = vmatpush1.xpose.msra.mxu0 0.0
  %727 = vmatprep.subr.mxu0 0.0
  %728 = vmatpush1.xpose.msra.mxu0 0.0
  %729 = vmatprep.subr.mxu0 0.0
  %730 = vmatpush1.xpose.msra.mxu0 0.0
  %731 = vmatprep.subr.mxu0 0.0
  %732 = vmatpush1.xpose.msra.mxu0 0.0
  %733 = vmatprep.subr.mxu0 0.0
  %734 = vmatpush1.xpose.msra.mxu0 0.0
  %735 = vmatprep.subr.mxu0 0.0
  %736 = vmatpush1.xpose.msra.mxu0 0.0
  %737 = vmatprep.subr.mxu0 0.0
  %738 = vmatpush1.xpose.msra.mxu0 0.0
  %739 = vmatprep.subr.mxu0 0.0
  %740 = vmatpush1.xpose.msra.mxu0 0.0
  %741 = vmatprep.subr.mxu0 0.0
  %742 = vmatpush1.xpose.msra.mxu0 0.0
  %743 = vmatprep.subr.mxu0 0.0
  %744 = vmatpush1.xpose.msra.mxu0 0.0
  %745 = vmatprep.subr.mxu0 0.0
  %746 = vmatpush1.xpose.msra.mxu0 0.0
  %747 = vmatprep.subr.mxu0 0.0
  %748 = vmatpush1.xpose.msra.mxu0 0.0
  %749 = vmatprep.subr.mxu0 0.0
  %750 = vmatpush1.xpose.msra.mxu0 0.0
  %751 = vmatprep.subr.mxu0 0.0
  %752 = vmatpush1.xpose.msra.mxu0 0.0
  %753 = vmatprep.mubr.f32.mxu0 0.0
  %v754 = vand.u32 %v95, 4294901760
  %v755 = vsub.f32 %v95, %v754
  %v756 = vand.u32 %v755, 4294901760
  %757 = vmatmul.mubr.f32.gmra.mrb[0].mxu0 %v756
  %v758 = vpop.f32.mrb[0].mxu0
  %v759 = vadd.f32 %v621, %v758
  %v760 = vpop.f32.mrb[0].mxu0
  %761 = vmatprep.mubr.f32.mxu0 0.0
  %v762 = vand.u32 %v98, 4294901760
  %v763 = vsub.f32 %v98, %v762
  %v764 = vand.u32 %v763, 4294901760
  %765 = vmatmul.mubr.f32.gmra.mrb[0].mxu0 %v764
  %v766 = vpop.f32.mrb[0].mxu0
  %v767 = vadd.f32 %v628, %v766
  %v768 = vpop.f32.mrb[0].mxu0
  %769 = vmatprep.mubr.f32.mxu0 0.0
  %v770 = vand.u32 %v101, 4294901760
  %v771 = vsub.f32 %v101, %v770
  %v772 = vand.u32 %v771, 4294901760
  %773 = vmatmul.mubr.f32.gmra.mrb[0].mxu0 %v772
  %v774 = vpop.f32.mrb[0].mxu0
  %v775 = vadd.f32 %v635, %v774
  %v776 = vpop.f32.mrb[0].mxu0
  %777 = vmatprep.mubr.f32.mxu0 0.0
  %v778 = vand.u32 %v104, 4294901760
  %v779 = vsub.f32 %v104, %v778
  %v780 = vand.u32 %v779, 4294901760
  %781 = vmatmul.mubr.f32.gmra.mrb[0].mxu0 %v780
  %v782 = vpop.f32.mrb[0].mxu0
  %v783 = vadd.f32 %v642, %v782
  %v784 = vpop.f32.mrb[0].mxu0
  %785 = vmatprep.mubr.f32.mxu0 0.0
  %v786 = vand.u32 %v107, 4294901760
  %v787 = vsub.f32 %v107, %v786
  %v788 = vand.u32 %v787, 4294901760
  %789 = vmatmul.mubr.f32.gmra.mrb[0].mxu0 %v788
  %v790 = vpop.f32.mrb[0].mxu0
  %v791 = vadd.f32 %v649, %v790
  %v792 = vpop.f32.mrb[0].mxu0
  %793 = vmatprep.mubr.f32.mxu0 0.0
  %v794 = vand.u32 %v110, 4294901760
  %v795 = vsub.f32 %v110, %v794
  %v796 = vand.u32 %v795, 4294901760
  %797 = vmatmul.mubr.f32.gmra.mrb[0].mxu0 %v796
  %v798 = vpop.f32.mrb[0].mxu0
  %v799 = vadd.f32 %v656, %v798
  %v800 = vpop.f32.mrb[0].mxu0
  %801 = vmatprep.mubr.f32.mxu0 0.0
  %v802 = vand.u32 %v113, 4294901760
  %v803 = vsub.f32 %v113, %v802
  %v804 = vand.u32 %v803, 4294901760
  %805 = vmatmul.mubr.f32.gmra.mrb[0].mxu0 %v804
  %v806 = vpop.f32.mrb[0].mxu0
  %v807 = vadd.f32 %v663, %v806
  %v808 = vpop.f32.mrb[0].mxu0
  %809 = vmatprep.mubr.f32.mxu0 0.0
  %v810 = vand.u32 %v116, 4294901760
  %v811 = vsub.f32 %v116, %v810
  %v812 = vand.u32 %v811, 4294901760
  %813 = vmatmul.mubr.f32.gmra.mrb[0].mxu0 %v812
  %v814 = vpop.f32.mrb[0].mxu0
  %v815 = vadd.f32 %v670, %v814
  %v816 = vpop.f32.mrb[0].mxu0
  %817 = vdwg.mxu0
  %818 = vmatprep.subr.mxu0 0.0
  %v819 = vand.u32 %v119, 4294901760
  %v820 = vsub.f32 %v119, %v819
  %v821 = vand.u32 %v820, 4294901760
  %822 = vmatpush1.xpose.msra.mxu0 %v821
  %823 = vmatprep.subr.mxu0 0.0
  %v824 = vand.u32 %v122, 4294901760
  %v825 = vsub.f32 %v122, %v824
  %v826 = vand.u32 %v825, 4294901760
  %827 = vmatpush1.xpose.msra.mxu0 %v826
  %828 = vmatprep.subr.mxu0 0.0
  %v829 = vand.u32 %v125, 4294901760
  %v830 = vsub.f32 %v125, %v829
  %v831 = vand.u32 %v830, 4294901760
  %832 = vmatpush1.xpose.msra.mxu0 %v831
  %833 = vmatprep.subr.mxu0 0.0
  %v834 = vand.u32 %v128, 4294901760
  %v835 = vsub.f32 %v128, %v834
  %v836 = vand.u32 %v835, 4294901760
  %837 = vmatpush1.xpose.msra.mxu0 %v836
  %838 = vmatprep.subr.mxu0 0.0
  %v839 = vand.u32 %v131, 4294901760
  %v840 = vsub.f32 %v131, %v839
  %v841 = vand.u32 %v840, 4294901760
  %842 = vmatpush1.xpose.msra.mxu0 %v841
  %843 = vmatprep.subr.mxu0 0.0
  %v844 = vand.u32 %v134, 4294901760
  %v845 = vsub.f32 %v134, %v844
  %v846 = vand.u32 %v845, 4294901760
  %847 = vmatpush1.xpose.msra.mxu0 %v846
  %848 = vmatprep.subr.mxu0 0.0
  %v849 = vand.u32 %v137, 4294901760
  %v850 = vsub.f32 %v137, %v849
  %v851 = vand.u32 %v850, 4294901760
  %852 = vmatpush1.xpose.msra.mxu0 %v851
  %853 = vmatprep.subr.mxu0 0.0
  %v854 = vand.u32 %v140, 4294901760
  %v855 = vsub.f32 %v140, %v854
  %v856 = vand.u32 %v855, 4294901760
  %857 = vmatpush1.xpose.msra.mxu0 %v856
  %858 = vmatprep.subr.mxu0 0.0
  %v859 = vand.u32 %v143, 4294901760
  %v860 = vsub.f32 %v143, %v859
  %v861 = vand.u32 %v860, 4294901760
  %862 = vmatpush1.xpose.msra.mxu0 %v861
  %863 = vmatprep.subr.mxu0 0.0
  %v864 = vand.u32 %v146, 4294901760
  %v865 = vsub.f32 %v146, %v864
  %v866 = vand.u32 %v865, 4294901760
  %867 = vmatpush1.xpose.msra.mxu0 %v866
  %868 = vmatprep.subr.mxu0 0.0
  %v869 = vand.u32 %v149, 4294901760
  %v870 = vsub.f32 %v149, %v869
  %v871 = vand.u32 %v870, 4294901760
  %872 = vmatpush1.xpose.msra.mxu0 %v871
  %873 = vmatprep.subr.mxu0 0.0
  %v874 = vand.u32 %v152, 4294901760
  %v875 = vsub.f32 %v152, %v874
  %v876 = vand.u32 %v875, 4294901760
  %877 = vmatpush1.xpose.msra.mxu0 %v876
  %878 = vmatprep.subr.mxu0 0.0
  %v879 = vand.u32 %v155, 4294901760
  %v880 = vsub.f32 %v155, %v879
  %v881 = vand.u32 %v880, 4294901760
  %882 = vmatpush1.xpose.msra.mxu0 %v881
  %883 = vmatprep.subr.mxu0 0.0
  %v884 = vand.u32 %v158, 4294901760
  %v885 = vsub.f32 %v158, %v884
  %v886 = vand.u32 %v885, 4294901760
  %887 = vmatpush1.xpose.msra.mxu0 %v886
  %888 = vmatprep.subr.mxu0 0.0
  %v889 = vand.u32 %v161, 4294901760
  %v890 = vsub.f32 %v161, %v889
  %v891 = vand.u32 %v890, 4294901760
  %892 = vmatpush1.xpose.msra.mxu0 %v891
  %893 = vmatprep.subr.mxu0 0.0
  %v894 = vand.u32 %v164, 4294901760
  %v895 = vsub.f32 %v164, %v894
  %v896 = vand.u32 %v895, 4294901760
  %897 = vmatpush1.xpose.msra.mxu0 %v896
  %898 = vmatprep.subr.mxu0 0.0
  %899 = vmatpush1.xpose.msra.mxu0 0.0
  %900 = vmatprep.subr.mxu0 0.0
  %901 = vmatpush1.xpose.msra.mxu0 0.0
  %902 = vmatprep.subr.mxu0 0.0
  %903 = vmatpush1.xpose.msra.mxu0 0.0
  %904 = vmatprep.subr.mxu0 0.0
  %905 = vmatpush1.xpose.msra.mxu0 0.0
  %906 = vmatprep.subr.mxu0 0.0
  %907 = vmatpush1.xpose.msra.mxu0 0.0
  %908 = vmatprep.subr.mxu0 0.0
  %909 = vmatpush1.xpose.msra.mxu0 0.0
  %910 = vmatprep.subr.mxu0 0.0
  %911 = vmatpush1.xpose.msra.mxu0 0.0
  %912 = vmatprep.subr.mxu0 0.0
  %913 = vmatpush1.xpose.msra.mxu0 0.0
  %914 = vmatprep.subr.mxu0 0.0
  %915 = vmatpush1.xpose.msra.mxu0 0.0
  %916 = vmatprep.subr.mxu0 0.0
  %917 = vmatpush1.xpose.msra.mxu0 0.0
  %918 = vmatprep.subr.mxu0 0.0
  %919 = vmatpush1.xpose.msra.mxu0 0.0
  %920 = vmatprep.subr.mxu0 0.0
  %921 = vmatpush1.xpose.msra.mxu0 0.0
  %922 = vmatprep.subr.mxu0 0.0
  %923 = vmatpush1.xpose.msra.mxu0 0.0
  %924 = vmatprep.subr.mxu0 0.0
  %925 = vmatpush1.xpose.msra.mxu0 0.0
  %926 = vmatprep.subr.mxu0 0.0
  %927 = vmatpush1.xpose.msra.mxu0 0.0
  %928 = vmatprep.subr.mxu0 0.0
  %929 = vmatpush1.xpose.msra.mxu0 0.0
  %930 = vmatprep.mubr.f32.mxu0 0.0
  %v931 = vand.u32 %v95, 4294901760
  %932 = vmatmul.mubr.f32.gmra.mrb[0].mxu0 %v931
  %v933 = vpop.f32.mrb[0].mxu0
  %v934 = vadd.f32 %v759, %v933
  %v935 = vpop.f32.mrb[0].mxu0
  %936 = vmatprep.mubr.f32.mxu0 0.0
  %v937 = vand.u32 %v98, 4294901760
  %938 = vmatmul.mubr.f32.gmra.mrb[0].mxu0 %v937
  %v939 = vpop.f32.mrb[0].mxu0
  %v940 = vadd.f32 %v767, %v939
  %v941 = vpop.f32.mrb[0].mxu0
  %942 = vmatprep.mubr.f32.mxu0 0.0
  %v943 = vand.u32 %v101, 4294901760
  %944 = vmatmul.mubr.f32.gmra.mrb[0].mxu0 %v943
  %v945 = vpop.f32.mrb[0].mxu0
  %v946 = vadd.f32 %v775, %v945
  %v947 = vpop.f32.mrb[0].mxu0
  %948 = vmatprep.mubr.f32.mxu0 0.0
  %v949 = vand.u32 %v104, 4294901760
  %950 = vmatmul.mubr.f32.gmra.mrb[0].mxu0 %v949
  %v951 = vpop.f32.mrb[0].mxu0
  %v952 = vadd.f32 %v783, %v951
  %v953 = vpop.f32.mrb[0].mxu0
  %954 = vmatprep.mubr.f32.mxu0 0.0
  %v955 = vand.u32 %v107, 4294901760
  %956 = vmatmul.mubr.f32.gmra.mrb[0].mxu0 %v955
  %v957 = vpop.f32.mrb[0].mxu0
  %v958 = vadd.f32 %v791, %v957
  %v959 = vpop.f32.mrb[0].mxu0
  %960 = vmatprep.mubr.f32.mxu0 0.0
  %v961 = vand.u32 %v110, 4294901760
  %962 = vmatmul.mubr.f32.gmra.mrb[0].mxu0 %v961
  %v963 = vpop.f32.mrb[0].mxu0
  %v964 = vadd.f32 %v799, %v963
  %v965 = vpop.f32.mrb[0].mxu0
  %966 = vmatprep.mubr.f32.mxu0 0.0
  %v967 = vand.u32 %v113, 4294901760
  %968 = vmatmul.mubr.f32.gmra.mrb[0].mxu0 %v967
  %v969 = vpop.f32.mrb[0].mxu0
  %v970 = vadd.f32 %v807, %v969
  %v971 = vpop.f32.mrb[0].mxu0
  %972 = vmatprep.mubr.f32.mxu0 0.0
  %v973 = vand.u32 %v116, 4294901760
  %974 = vmatmul.mubr.f32.gmra.mrb[0].mxu0 %v973
  %v975 = vpop.f32.mrb[0].mxu0
  %v976 = vadd.f32 %v815, %v975
  %v977 = vpop.f32.mrb[0].mxu0
  %978 = vdwg.mxu0
  %979 = vmatprep.subr.mxu0 0.0
  %v980 = vand.u32 %v119, 4294901760
  %981 = vmatpush1.xpose.msra.mxu0 %v980
  %982 = vmatprep.subr.mxu0 0.0
  %v983 = vand.u32 %v122, 4294901760
  %984 = vmatpush1.xpose.msra.mxu0 %v983
  %985 = vmatprep.subr.mxu0 0.0
  %v986 = vand.u32 %v125, 4294901760
  %987 = vmatpush1.xpose.msra.mxu0 %v986
  %988 = vmatprep.subr.mxu0 0.0
  %v989 = vand.u32 %v128, 4294901760
  %990 = vmatpush1.xpose.msra.mxu0 %v989
  %991 = vmatprep.subr.mxu0 0.0
  %v992 = vand.u32 %v131, 4294901760
  %993 = vmatpush1.xpose.msra.mxu0 %v992
  %994 = vmatprep.subr.mxu0 0.0
  %v995 = vand.u32 %v134, 4294901760
  %996 = vmatpush1.xpose.msra.mxu0 %v995
  %997 = vmatprep.subr.mxu0 0.0
  %v998 = vand.u32 %v137, 4294901760
  %999 = vmatpush1.xpose.msra.mxu0 %v998
  %1000 = vmatprep.subr.mxu0 0.0
  %v1001 = vand.u32 %v140, 4294901760
  %1002 = vmatpush1.xpose.msra.mxu0 %v1001
  %1003 = vmatprep.subr.mxu0 0.0
  %v1004 = vand.u32 %v143, 4294901760
  %1005 = vmatpush1.xpose.msra.mxu0 %v1004
  %1006 = vmatprep.subr.mxu0 0.0
  %v1007 = vand.u32 %v146, 4294901760
  %1008 = vmatpush1.xpose.msra.mxu0 %v1007
  %1009 = vmatprep.subr.mxu0 0.0
  %v1010 = vand.u32 %v149, 4294901760
  %1011 = vmatpush1.xpose.msra.mxu0 %v1010
  %1012 = vmatprep.subr.mxu0 0.0
  %v1013 = vand.u32 %v152, 4294901760
  %1014 = vmatpush1.xpose.msra.mxu0 %v1013
  %1015 = vmatprep.subr.mxu0 0.0
  %v1016 = vand.u32 %v155, 4294901760
  %1017 = vmatpush1.xpose.msra.mxu0 %v1016
  %1018 = vmatprep.subr.mxu0 0.0
  %v1019 = vand.u32 %v158, 4294901760
  %1020 = vmatpush1.xpose.msra.mxu0 %v1019
  %1021 = vmatprep.subr.mxu0 0.0
  %v1022 = vand.u32 %v161, 4294901760
  %1023 = vmatpush1.xpose.msra.mxu0 %v1022
  %1024 = vmatprep.subr.mxu0 0.0
  %v1025 = vand.u32 %v164, 4294901760
  %1026 = vmatpush1.xpose.msra.mxu0 %v1025
  %1027 = vmatprep.subr.mxu0 0.0
  %1028 = vmatpush1.xpose.msra.mxu0 0.0
  %1029 = vmatprep.subr.mxu0 0.0
  %1030 = vmatpush1.xpose.msra.mxu0 0.0
  %1031 = vmatprep.subr.mxu0 0.0
  %1032 = vmatpush1.xpose.msra.mxu0 0.0
  %1033 = vmatprep.subr.mxu0 0.0
  %1034 = vmatpush1.xpose.msra.mxu0 0.0
  %1035 = vmatprep.subr.mxu0 0.0
  %1036 = vmatpush1.xpose.msra.mxu0 0.0
  %1037 = vmatprep.subr.mxu0 0.0
  %1038 = vmatpush1.xpose.msra.mxu0 0.0
  %1039 = vmatprep.subr.mxu0 0.0
  %1040 = vmatpush1.xpose.msra.mxu0 0.0
  %1041 = vmatprep.subr.mxu0 0.0
  %1042 = vmatpush1.xpose.msra.mxu0 0.0
  %1043 = vmatprep.subr.mxu0 0.0
  %1044 = vmatpush1.xpose.msra.mxu0 0.0
  %1045 = vmatprep.subr.mxu0 0.0
  %1046 = vmatpush1.xpose.msra.mxu0 0.0
  %1047 = vmatprep.subr.mxu0 0.0
  %1048 = vmatpush1.xpose.msra.mxu0 0.0
  %1049 = vmatprep.subr.mxu0 0.0
  %1050 = vmatpush1.xpose.msra.mxu0 0.0
  %1051 = vmatprep.subr.mxu0 0.0
  %1052 = vmatpush1.xpose.msra.mxu0 0.0
  %1053 = vmatprep.subr.mxu0 0.0
  %1054 = vmatpush1.xpose.msra.mxu0 0.0
  %1055 = vmatprep.subr.mxu0 0.0
  %1056 = vmatpush1.xpose.msra.mxu0 0.0
  %1057 = vmatprep.subr.mxu0 0.0
  %1058 = vmatpush1.xpose.msra.mxu0 0.0
  %1059 = vmatprep.mubr.f32.mxu0 0.0
  %v1060 = vand.u32 %v95, 4294901760
  %1061 = vmatmul.mubr.f32.gmra.mrb[0].mxu0 %v1060
  %v1062 = vpop.f32.mrb[0].mxu0
  %v1063 = vadd.f32 %v934, %v1062
  %v1064 = vpop.f32.mrb[0].mxu0
  %1065 = vmatprep.mubr.f32.mxu0 0.0
  %v1066 = vand.u32 %v98, 4294901760
  %1067 = vmatmul.mubr.f32.gmra.mrb[0].mxu0 %v1066
  %v1068 = vpop.f32.mrb[0].mxu0
  %v1069 = vadd.f32 %v940, %v1068
  %v1070 = vpop.f32.mrb[0].mxu0
  %1071 = vmatprep.mubr.f32.mxu0 0.0
  %v1072 = vand.u32 %v101, 4294901760
  %1073 = vmatmul.mubr.f32.gmra.mrb[0].mxu0 %v1072
  %v1074 = vpop.f32.mrb[0].mxu0
  %v1075 = vadd.f32 %v946, %v1074
  %v1076 = vpop.f32.mrb[0].mxu0
  %1077 = vmatprep.mubr.f32.mxu0 0.0
  %v1078 = vand.u32 %v104, 4294901760
  %1079 = vmatmul.mubr.f32.gmra.mrb[0].mxu0 %v1078
  %v1080 = vpop.f32.mrb[0].mxu0
  %v1081 = vadd.f32 %v952, %v1080
  %v1082 = vpop.f32.mrb[0].mxu0
  %1083 = vmatprep.mubr.f32.mxu0 0.0
  %v1084 = vand.u32 %v107, 4294901760
  %1085 = vmatmul.mubr.f32.gmra.mrb[0].mxu0 %v1084
  %v1086 = vpop.f32.mrb[0].mxu0
  %v1087 = vadd.f32 %v958, %v1086
  %v1088 = vpop.f32.mrb[0].mxu0
  %1089 = vmatprep.mubr.f32.mxu0 0.0
  %v1090 = vand.u32 %v110, 4294901760
  %1091 = vmatmul.mubr.f32.gmra.mrb[0].mxu0 %v1090
  %v1092 = vpop.f32.mrb[0].mxu0
  %v1093 = vadd.f32 %v964, %v1092
  %v1094 = vpop.f32.mrb[0].mxu0
  %1095 = vmatprep.mubr.f32.mxu0 0.0
  %v1096 = vand.u32 %v113, 4294901760
  %1097 = vmatmul.mubr.f32.gmra.mrb[0].mxu0 %v1096
  %v1098 = vpop.f32.mrb[0].mxu0
  %v1099 = vadd.f32 %v970, %v1098
  %v1100 = vpop.f32.mrb[0].mxu0
  %1101 = vmatprep.mubr.f32.mxu0 0.0
  %v1102 = vand.u32 %v116, 4294901760
  %1103 = vmatmul.mubr.f32.gmra.mrb[0].mxu0 %v1102
  %v1104 = vpop.f32.mrb[0].mxu0
  %v1105 = vadd.f32 %v976, %v1104
  %v1106 = vpop.f32.mrb[0].mxu0
  %1107 = vdwg.mxu0
  %v1108 = vmax.f32 %v1063, 0.0
  %v1109 = vmax.f32 %v1069, 0.0
  %v1110 = vmax.f32 %v1075, 0.0
  %v1111 = vmax.f32 %v1081, 0.0
  %v1112 = vmax.f32 %v1087, 0.0
  %v1113 = vmax.f32 %v1093, 0.0
  %v1114 = vmax.f32 %v1099, 0.0
  %v1115 = vmax.f32 %v1105, 0.0
  %v1116 = vld [vmem:[%s2] sm:$0xff]
  %v1117 = vld [vmem:[%s2 + $0x8] sm:$0xff]
  %v1118 = vld [vmem:[%s2 + $0x10] sm:$0xff]
  %v1119 = vld [vmem:[%s2 + $0x18] sm:$0xff]
  %v1120 = vld [vmem:[%s2 + $0x20] sm:$0xff]
  %v1121 = vld [vmem:[%s2 + $0x28] sm:$0xff]
  %v1122 = vld [vmem:[%s2 + $0x30] sm:$0xff]
  %v1123 = vld [vmem:[%s2 + $0x38] sm:$0xff]
  %1124 = vset.pattern.permute.xlu0 1
  %1125 = vperm.xlu0 %1124, %v20
  %v1126 = vpop.permute.xlu0 %1125
  %1128 = vset.pattern.permute.xlu0 1
  %1129 = vperm.xlu0 %1128, %v21
  %v1130 = vpop.permute.xlu0 %1129
  %1132 = vset.pattern.permute.xlu0 1
  %1133 = vperm.xlu0 %1132, %v22
  %v1134 = vpop.permute.xlu0 %1133
  %1136 = vset.pattern.permute.xlu0 1
  %1137 = vperm.xlu0 %1136, %v23
  %v1138 = vpop.permute.xlu0 %1137
  %1140 = vset.pattern.permute.xlu0 1
  %1141 = vperm.xlu0 %1140, %v24
  %v1142 = vpop.permute.xlu0 %1141
  %1144 = vset.pattern.permute.xlu0 1
  %1145 = vperm.xlu0 %1144, %v25
  %v1146 = vpop.permute.xlu0 %1145
  %1148 = vset.pattern.permute.xlu0 1
  %1149 = vperm.xlu0 %1148, %v26
  %v1150 = vpop.permute.xlu0 %1149
  %1152 = vset.pattern.permute.xlu0 1
  %1153 = vperm.xlu0 %1152, %v27
  %v1154 = vpop.permute.xlu0 %1153
  %vm1156 = vcmask 523264
  %v1158 = vsel %vm1156, %v1116, 0
  %v1161 = vsel %vm1156, %v1117, 0
  %v1164 = vsel %vm1156, %v1118, 0
  %v1167 = vsel %vm1156, %v1119, 0
  %v1170 = vsel %vm1156, %v1120, 0
  %v1173 = vsel %vm1156, %v1121, 0
  %v1176 = vsel %vm1156, %v1122, 0
  %v1179 = vsel %vm1156, %v1123, 0
  %1181 = vmatprep.subr.mxu0 0.0
  %v1182 = vand.u32 %v1108, 4294901760
  %1183 = vmatpush1.msra.mxu0 %v1182
  %1184 = vmatprep.subr.mxu0 0.0
  %v1185 = vand.u32 %v1109, 4294901760
  %1186 = vmatpush1.msra.mxu0 %v1185
  %1187 = vmatprep.subr.mxu0 0.0
  %v1188 = vand.u32 %v1110, 4294901760
  %1189 = vmatpush1.msra.mxu0 %v1188
  %1190 = vmatprep.subr.mxu0 0.0
  %v1191 = vand.u32 %v1111, 4294901760
  %1192 = vmatpush1.msra.mxu0 %v1191
  %1193 = vmatprep.subr.mxu0 0.0
  %v1194 = vand.u32 %v1112, 4294901760
  %1195 = vmatpush1.msra.mxu0 %v1194
  %1196 = vmatprep.subr.mxu0 0.0
  %v1197 = vand.u32 %v1113, 4294901760
  %1198 = vmatpush1.msra.mxu0 %v1197
  %1199 = vmatprep.subr.mxu0 0.0
  %v1200 = vand.u32 %v1114, 4294901760
  %1201 = vmatpush1.msra.mxu0 %v1200
  %1202 = vmatprep.subr.mxu0 0.0
  %v1203 = vand.u32 %v1115, 4294901760
  %1204 = vmatpush1.msra.mxu0 %v1203
  %1205 = vmatprep.subr.mxu0 0.0
  %1206 = vmatpush1.msra.mxu0 0.0
  %1207 = vmatprep.subr.mxu0 0.0
  %1208 = vmatpush1.msra.mxu0 0.0
  %1209 = vmatprep.subr.mxu0 0.0
  %1210 = vmatpush1.msra.mxu0 0.0
  %1211 = vmatprep.subr.mxu0 0.0
  %1212 = vmatpush1.msra.mxu0 0.0
  %1213 = vmatprep.subr.mxu0 0.0
  %1214 = vmatpush1.msra.mxu0 0.0
  %1215 = vmatprep.subr.mxu0 0.0
  %1216 = vmatpush1.msra.mxu0 0.0
  %1217 = vmatprep.subr.mxu0 0.0
  %1218 = vmatpush1.msra.mxu0 0.0
  %1219 = vmatprep.subr.mxu0 0.0
  %1220 = vmatpush1.msra.mxu0 0.0
  %1221 = vmatprep.subr.mxu0 0.0
  %1222 = vmatpush1.msra.mxu0 0.0
  %1223 = vmatprep.subr.mxu0 0.0
  %1224 = vmatpush1.msra.mxu0 0.0
  %1225 = vmatprep.subr.mxu0 0.0
  %1226 = vmatpush1.msra.mxu0 0.0
  %1227 = vmatprep.subr.mxu0 0.0
  %1228 = vmatpush1.msra.mxu0 0.0
  %1229 = vmatprep.subr.mxu0 0.0
  %1230 = vmatpush1.msra.mxu0 0.0
  %1231 = vmatprep.subr.mxu0 0.0
  %1232 = vmatpush1.msra.mxu0 0.0
  %1233 = vmatprep.subr.mxu0 0.0
  %1234 = vmatpush1.msra.mxu0 0.0
  %1235 = vmatprep.subr.mxu0 0.0
  %1236 = vmatpush1.msra.mxu0 0.0
  %1237 = vmatprep.subr.mxu0 0.0
  %1238 = vmatpush1.msra.mxu0 0.0
  %1239 = vmatprep.subr.mxu0 0.0
  %1240 = vmatpush1.msra.mxu0 0.0
  %1241 = vmatprep.subr.mxu0 0.0
  %1242 = vmatpush1.msra.mxu0 0.0
  %1243 = vmatprep.subr.mxu0 0.0
  %1244 = vmatpush1.msra.mxu0 0.0
  %1245 = vmatprep.subr.mxu0 0.0
  %1246 = vmatpush1.msra.mxu0 0.0
  %1247 = vmatprep.subr.mxu0 0.0
  %1248 = vmatpush1.msra.mxu0 0.0
  %1249 = vmatprep.subr.mxu0 0.0
  %1250 = vmatpush1.msra.mxu0 0.0
  %1251 = vmatprep.subr.mxu0 0.0
  %1252 = vmatpush1.msra.mxu0 0.0
  %1253 = vmatprep.mubr.f32.mxu0 0.0
  %v1254 = vand.u32 %v1158, 4294901760
  %v1255 = vsub.f32 %v1158, %v1254
  %v1256 = vand.u32 %v1255, 4294901760
  %v1257 = vsub.f32 %v1255, %v1256
  %v1258 = vand.u32 %v1257, 4294901760
  %1259 = vmatmul.mubr.f32.gmra.mrb[0].mxu0 %v1258
  %v1260 = vpop.f32.mrb[0].mxu0
  %v1261 = vadd.f32 %v1126, %v1260
  %v1262 = vpop.f32.mrb[0].mxu0
  %1263 = vmatprep.mubr.f32.mxu0 0.0
  %v1264 = vand.u32 %v1161, 4294901760
  %v1265 = vsub.f32 %v1161, %v1264
  %v1266 = vand.u32 %v1265, 4294901760
  %v1267 = vsub.f32 %v1265, %v1266
  %v1268 = vand.u32 %v1267, 4294901760
  %1269 = vmatmul.mubr.f32.gmra.mrb[0].mxu0 %v1268
  %v1270 = vpop.f32.mrb[0].mxu0
  %v1271 = vadd.f32 %v1130, %v1270
  %v1272 = vpop.f32.mrb[0].mxu0
  %1273 = vmatprep.mubr.f32.mxu0 0.0
  %v1274 = vand.u32 %v1164, 4294901760
  %v1275 = vsub.f32 %v1164, %v1274
  %v1276 = vand.u32 %v1275, 4294901760
  %v1277 = vsub.f32 %v1275, %v1276
  %v1278 = vand.u32 %v1277, 4294901760
  %1279 = vmatmul.mubr.f32.gmra.mrb[0].mxu0 %v1278
  %v1280 = vpop.f32.mrb[0].mxu0
  %v1281 = vadd.f32 %v1134, %v1280
  %v1282 = vpop.f32.mrb[0].mxu0
  %1283 = vmatprep.mubr.f32.mxu0 0.0
  %v1284 = vand.u32 %v1167, 4294901760
  %v1285 = vsub.f32 %v1167, %v1284
  %v1286 = vand.u32 %v1285, 4294901760
  %v1287 = vsub.f32 %v1285, %v1286
  %v1288 = vand.u32 %v1287, 4294901760
  %1289 = vmatmul.mubr.f32.gmra.mrb[0].mxu0 %v1288
  %v1290 = vpop.f32.mrb[0].mxu0
  %v1291 = vadd.f32 %v1138, %v1290
  %v1292 = vpop.f32.mrb[0].mxu0
  %1293 = vmatprep.mubr.f32.mxu0 0.0
  %v1294 = vand.u32 %v1170, 4294901760
  %v1295 = vsub.f32 %v1170, %v1294
  %v1296 = vand.u32 %v1295, 4294901760
  %v1297 = vsub.f32 %v1295, %v1296
  %v1298 = vand.u32 %v1297, 4294901760
  %1299 = vmatmul.mubr.f32.gmra.mrb[0].mxu0 %v1298
  %v1300 = vpop.f32.mrb[0].mxu0
  %v1301 = vadd.f32 %v1142, %v1300
  %v1302 = vpop.f32.mrb[0].mxu0
  %1303 = vmatprep.mubr.f32.mxu0 0.0
  %v1304 = vand.u32 %v1173, 4294901760
  %v1305 = vsub.f32 %v1173, %v1304
  %v1306 = vand.u32 %v1305, 4294901760
  %v1307 = vsub.f32 %v1305, %v1306
  %v1308 = vand.u32 %v1307, 4294901760
  %1309 = vmatmul.mubr.f32.gmra.mrb[0].mxu0 %v1308
  %v1310 = vpop.f32.mrb[0].mxu0
  %v1311 = vadd.f32 %v1146, %v1310
  %v1312 = vpop.f32.mrb[0].mxu0
  %1313 = vmatprep.mubr.f32.mxu0 0.0
  %v1314 = vand.u32 %v1176, 4294901760
  %v1315 = vsub.f32 %v1176, %v1314
  %v1316 = vand.u32 %v1315, 4294901760
  %v1317 = vsub.f32 %v1315, %v1316
  %v1318 = vand.u32 %v1317, 4294901760
  %1319 = vmatmul.mubr.f32.gmra.mrb[0].mxu0 %v1318
  %v1320 = vpop.f32.mrb[0].mxu0
  %v1321 = vadd.f32 %v1150, %v1320
  %v1322 = vpop.f32.mrb[0].mxu0
  %1323 = vmatprep.mubr.f32.mxu0 0.0
  %v1324 = vand.u32 %v1179, 4294901760
  %v1325 = vsub.f32 %v1179, %v1324
  %v1326 = vand.u32 %v1325, 4294901760
  %v1327 = vsub.f32 %v1325, %v1326
  %v1328 = vand.u32 %v1327, 4294901760
  %1329 = vmatmul.mubr.f32.gmra.mrb[0].mxu0 %v1328
  %v1330 = vpop.f32.mrb[0].mxu0
  %v1331 = vadd.f32 %v1154, %v1330
  %v1332 = vpop.f32.mrb[0].mxu0
  %1333 = vdwg.mxu0
  %1334 = vmatprep.subr.mxu0 0.0
  %v1335 = vand.u32 %v1108, 4294901760
  %v1336 = vsub.f32 %v1108, %v1335
  %v1337 = vand.u32 %v1336, 4294901760
  %v1338 = vsub.f32 %v1336, %v1337
  %v1339 = vand.u32 %v1338, 4294901760
  %1340 = vmatpush1.msra.mxu0 %v1339
  %1341 = vmatprep.subr.mxu0 0.0
  %v1342 = vand.u32 %v1109, 4294901760
  %v1343 = vsub.f32 %v1109, %v1342
  %v1344 = vand.u32 %v1343, 4294901760
  %v1345 = vsub.f32 %v1343, %v1344
  %v1346 = vand.u32 %v1345, 4294901760
  %1347 = vmatpush1.msra.mxu0 %v1346
  %1348 = vmatprep.subr.mxu0 0.0
  %v1349 = vand.u32 %v1110, 4294901760
  %v1350 = vsub.f32 %v1110, %v1349
  %v1351 = vand.u32 %v1350, 4294901760
  %v1352 = vsub.f32 %v1350, %v1351
  %v1353 = vand.u32 %v1352, 4294901760
  %1354 = vmatpush1.msra.mxu0 %v1353
  %1355 = vmatprep.subr.mxu0 0.0
  %v1356 = vand.u32 %v1111, 4294901760
  %v1357 = vsub.f32 %v1111, %v1356
  %v1358 = vand.u32 %v1357, 4294901760
  %v1359 = vsub.f32 %v1357, %v1358
  %v1360 = vand.u32 %v1359, 4294901760
  %1361 = vmatpush1.msra.mxu0 %v1360
  %1362 = vmatprep.subr.mxu0 0.0
  %v1363 = vand.u32 %v1112, 4294901760
  %v1364 = vsub.f32 %v1112, %v1363
  %v1365 = vand.u32 %v1364, 4294901760
  %v1366 = vsub.f32 %v1364, %v1365
  %v1367 = vand.u32 %v1366, 4294901760
  %1368 = vmatpush1.msra.mxu0 %v1367
  %1369 = vmatprep.subr.mxu0 0.0
  %v1370 = vand.u32 %v1113, 4294901760
  %v1371 = vsub.f32 %v1113, %v1370
  %v1372 = vand.u32 %v1371, 4294901760
  %v1373 = vsub.f32 %v1371, %v1372
  %v1374 = vand.u32 %v1373, 4294901760
  %1375 = vmatpush1.msra.mxu0 %v1374
  %1376 = vmatprep.subr.mxu0 0.0
  %v1377 = vand.u32 %v1114, 4294901760
  %v1378 = vsub.f32 %v1114, %v1377
  %v1379 = vand.u32 %v1378, 4294901760
  %v1380 = vsub.f32 %v1378, %v1379
  %v1381 = vand.u32 %v1380, 4294901760
  %1382 = vmatpush1.msra.mxu0 %v1381
  %1383 = vmatprep.subr.mxu0 0.0
  %v1384 = vand.u32 %v1115, 4294901760
  %v1385 = vsub.f32 %v1115, %v1384
  %v1386 = vand.u32 %v1385, 4294901760
  %v1387 = vsub.f32 %v1385, %v1386
  %v1388 = vand.u32 %v1387, 4294901760
  %1389 = vmatpush1.msra.mxu0 %v1388
  %1390 = vmatprep.subr.mxu0 0.0
  %1391 = vmatpush1.msra.mxu0 0.0
  %1392 = vmatprep.subr.mxu0 0.0
  %1393 = vmatpush1.msra.mxu0 0.0
  %1394 = vmatprep.subr.mxu0 0.0
  %1395 = vmatpush1.msra.mxu0 0.0
  %1396 = vmatprep.subr.mxu0 0.0
  %1397 = vmatpush1.msra.mxu0 0.0
  %1398 = vmatprep.subr.mxu0 0.0
  %1399 = vmatpush1.msra.mxu0 0.0
  %1400 = vmatprep.subr.mxu0 0.0
  %1401 = vmatpush1.msra.mxu0 0.0
  %1402 = vmatprep.subr.mxu0 0.0
  %1403 = vmatpush1.msra.mxu0 0.0
  %1404 = vmatprep.subr.mxu0 0.0
  %1405 = vmatpush1.msra.mxu0 0.0
  %1406 = vmatprep.subr.mxu0 0.0
  %1407 = vmatpush1.msra.mxu0 0.0
  %1408 = vmatprep.subr.mxu0 0.0
  %1409 = vmatpush1.msra.mxu0 0.0
  %1410 = vmatprep.subr.mxu0 0.0
  %1411 = vmatpush1.msra.mxu0 0.0
  %1412 = vmatprep.subr.mxu0 0.0
  %1413 = vmatpush1.msra.mxu0 0.0
  %1414 = vmatprep.subr.mxu0 0.0
  %1415 = vmatpush1.msra.mxu0 0.0
  %1416 = vmatprep.subr.mxu0 0.0
  %1417 = vmatpush1.msra.mxu0 0.0
  %1418 = vmatprep.subr.mxu0 0.0
  %1419 = vmatpush1.msra.mxu0 0.0
  %1420 = vmatprep.subr.mxu0 0.0
  %1421 = vmatpush1.msra.mxu0 0.0
  %1422 = vmatprep.subr.mxu0 0.0
  %1423 = vmatpush1.msra.mxu0 0.0
  %1424 = vmatprep.subr.mxu0 0.0
  %1425 = vmatpush1.msra.mxu0 0.0
  %1426 = vmatprep.subr.mxu0 0.0
  %1427 = vmatpush1.msra.mxu0 0.0
  %1428 = vmatprep.subr.mxu0 0.0
  %1429 = vmatpush1.msra.mxu0 0.0
  %1430 = vmatprep.subr.mxu0 0.0
  %1431 = vmatpush1.msra.mxu0 0.0
  %1432 = vmatprep.subr.mxu0 0.0
  %1433 = vmatpush1.msra.mxu0 0.0
  %1434 = vmatprep.subr.mxu0 0.0
  %1435 = vmatpush1.msra.mxu0 0.0
  %1436 = vmatprep.subr.mxu0 0.0
  %1437 = vmatpush1.msra.mxu0 0.0
  %1438 = vmatprep.mubr.f32.mxu0 0.0
  %v1439 = vand.u32 %v1158, 4294901760
  %1440 = vmatmul.mubr.f32.gmra.mrb[0].mxu0 %v1439
  %v1441 = vpop.f32.mrb[0].mxu0
  %v1442 = vadd.f32 %v1261, %v1441
  %v1443 = vpop.f32.mrb[0].mxu0
  %1444 = vmatprep.mubr.f32.mxu0 0.0
  %v1445 = vand.u32 %v1161, 4294901760
  %1446 = vmatmul.mubr.f32.gmra.mrb[0].mxu0 %v1445
  %v1447 = vpop.f32.mrb[0].mxu0
  %v1448 = vadd.f32 %v1271, %v1447
  %v1449 = vpop.f32.mrb[0].mxu0
  %1450 = vmatprep.mubr.f32.mxu0 0.0
  %v1451 = vand.u32 %v1164, 4294901760
  %1452 = vmatmul.mubr.f32.gmra.mrb[0].mxu0 %v1451
  %v1453 = vpop.f32.mrb[0].mxu0
  %v1454 = vadd.f32 %v1281, %v1453
  %v1455 = vpop.f32.mrb[0].mxu0
  %1456 = vmatprep.mubr.f32.mxu0 0.0
  %v1457 = vand.u32 %v1167, 4294901760
  %1458 = vmatmul.mubr.f32.gmra.mrb[0].mxu0 %v1457
  %v1459 = vpop.f32.mrb[0].mxu0
  %v1460 = vadd.f32 %v1291, %v1459
  %v1461 = vpop.f32.mrb[0].mxu0
  %1462 = vmatprep.mubr.f32.mxu0 0.0
  %v1463 = vand.u32 %v1170, 4294901760
  %1464 = vmatmul.mubr.f32.gmra.mrb[0].mxu0 %v1463
  %v1465 = vpop.f32.mrb[0].mxu0
  %v1466 = vadd.f32 %v1301, %v1465
  %v1467 = vpop.f32.mrb[0].mxu0
  %1468 = vmatprep.mubr.f32.mxu0 0.0
  %v1469 = vand.u32 %v1173, 4294901760
  %1470 = vmatmul.mubr.f32.gmra.mrb[0].mxu0 %v1469
  %v1471 = vpop.f32.mrb[0].mxu0
  %v1472 = vadd.f32 %v1311, %v1471
  %v1473 = vpop.f32.mrb[0].mxu0
  %1474 = vmatprep.mubr.f32.mxu0 0.0
  %v1475 = vand.u32 %v1176, 4294901760
  %1476 = vmatmul.mubr.f32.gmra.mrb[0].mxu0 %v1475
  %v1477 = vpop.f32.mrb[0].mxu0
  %v1478 = vadd.f32 %v1321, %v1477
  %v1479 = vpop.f32.mrb[0].mxu0
  %1480 = vmatprep.mubr.f32.mxu0 0.0
  %v1481 = vand.u32 %v1179, 4294901760
  %1482 = vmatmul.mubr.f32.gmra.mrb[0].mxu0 %v1481
  %v1483 = vpop.f32.mrb[0].mxu0
  %v1484 = vadd.f32 %v1331, %v1483
  %v1485 = vpop.f32.mrb[0].mxu0
  %1486 = vdwg.mxu0
  %1487 = vmatprep.subr.mxu0 0.0
  %v1488 = vand.u32 %v1108, 4294901760
  %v1489 = vsub.f32 %v1108, %v1488
  %1490 = vmatpush1.msra.mxu0 %v1489
  %1491 = vmatprep.subr.mxu0 0.0
  %v1492 = vand.u32 %v1109, 4294901760
  %v1493 = vsub.f32 %v1109, %v1492
  %1494 = vmatpush1.msra.mxu0 %v1493
  %1495 = vmatprep.subr.mxu0 0.0
  %v1496 = vand.u32 %v1110, 4294901760
  %v1497 = vsub.f32 %v1110, %v1496
  %1498 = vmatpush1.msra.mxu0 %v1497
  %1499 = vmatprep.subr.mxu0 0.0
  %v1500 = vand.u32 %v1111, 4294901760
  %v1501 = vsub.f32 %v1111, %v1500
  %1502 = vmatpush1.msra.mxu0 %v1501
  %1503 = vmatprep.subr.mxu0 0.0
  %v1504 = vand.u32 %v1112, 4294901760
  %v1505 = vsub.f32 %v1112, %v1504
  %1506 = vmatpush1.msra.mxu0 %v1505
  %1507 = vmatprep.subr.mxu0 0.0
  %v1508 = vand.u32 %v1113, 4294901760
  %v1509 = vsub.f32 %v1113, %v1508
  %1510 = vmatpush1.msra.mxu0 %v1509
  %1511 = vmatprep.subr.mxu0 0.0
  %v1512 = vand.u32 %v1114, 4294901760
  %v1513 = vsub.f32 %v1114, %v1512
  %1514 = vmatpush1.msra.mxu0 %v1513
  %1515 = vmatprep.subr.mxu0 0.0
  %v1516 = vand.u32 %v1115, 4294901760
  %v1517 = vsub.f32 %v1115, %v1516
  %1518 = vmatpush1.msra.mxu0 %v1517
  %1519 = vmatprep.subr.mxu0 0.0
  %1520 = vmatpush1.msra.mxu0 0.0
  %1521 = vmatprep.subr.mxu0 0.0
  %1522 = vmatpush1.msra.mxu0 0.0
  %1523 = vmatprep.subr.mxu0 0.0
  %1524 = vmatpush1.msra.mxu0 0.0
  %1525 = vmatprep.subr.mxu0 0.0
  %1526 = vmatpush1.msra.mxu0 0.0
  %1527 = vmatprep.subr.mxu0 0.0
  %1528 = vmatpush1.msra.mxu0 0.0
  %1529 = vmatprep.subr.mxu0 0.0
  %1530 = vmatpush1.msra.mxu0 0.0
  %1531 = vmatprep.subr.mxu0 0.0
  %1532 = vmatpush1.msra.mxu0 0.0
  %1533 = vmatprep.subr.mxu0 0.0
  %1534 = vmatpush1.msra.mxu0 0.0
  %1535 = vmatprep.subr.mxu0 0.0
  %1536 = vmatpush1.msra.mxu0 0.0
  %1537 = vmatprep.subr.mxu0 0.0
  %1538 = vmatpush1.msra.mxu0 0.0
  %1539 = vmatprep.subr.mxu0 0.0
  %1540 = vmatpush1.msra.mxu0 0.0
  %1541 = vmatprep.subr.mxu0 0.0
  %1542 = vmatpush1.msra.mxu0 0.0
  %1543 = vmatprep.subr.mxu0 0.0
  %1544 = vmatpush1.msra.mxu0 0.0
  %1545 = vmatprep.subr.mxu0 0.0
  %1546 = vmatpush1.msra.mxu0 0.0
  %1547 = vmatprep.subr.mxu0 0.0
  %1548 = vmatpush1.msra.mxu0 0.0
  %1549 = vmatprep.subr.mxu0 0.0
  %1550 = vmatpush1.msra.mxu0 0.0
  %1551 = vmatprep.subr.mxu0 0.0
  %1552 = vmatpush1.msra.mxu0 0.0
  %1553 = vmatprep.subr.mxu0 0.0
  %1554 = vmatpush1.msra.mxu0 0.0
  %1555 = vmatprep.subr.mxu0 0.0
  %1556 = vmatpush1.msra.mxu0 0.0
  %1557 = vmatprep.subr.mxu0 0.0
  %1558 = vmatpush1.msra.mxu0 0.0
  %1559 = vmatprep.subr.mxu0 0.0
  %1560 = vmatpush1.msra.mxu0 0.0
  %1561 = vmatprep.subr.mxu0 0.0
  %1562 = vmatpush1.msra.mxu0 0.0
  %1563 = vmatprep.subr.mxu0 0.0
  %1564 = vmatpush1.msra.mxu0 0.0
  %1565 = vmatprep.subr.mxu0 0.0
  %1566 = vmatpush1.msra.mxu0 0.0
  %1567 = vmatprep.mubr.f32.mxu0 0.0
  %v1568 = vand.u32 %v1158, 4294901760
  %v1569 = vsub.f32 %v1158, %v1568
  %1570 = vmatmul.mubr.f32.gmra.mrb[0].mxu0 %v1569
  %v1571 = vpop.f32.mrb[0].mxu0
  %v1572 = vadd.f32 %v1442, %v1571
  %v1573 = vpop.f32.mrb[0].mxu0
  %1574 = vmatprep.mubr.f32.mxu0 0.0
  %v1575 = vand.u32 %v1161, 4294901760
  %v1576 = vsub.f32 %v1161, %v1575
  %1577 = vmatmul.mubr.f32.gmra.mrb[0].mxu0 %v1576
  %v1578 = vpop.f32.mrb[0].mxu0
  %v1579 = vadd.f32 %v1448, %v1578
  %v1580 = vpop.f32.mrb[0].mxu0
  %1581 = vmatprep.mubr.f32.mxu0 0.0
  %v1582 = vand.u32 %v1164, 4294901760
  %v1583 = vsub.f32 %v1164, %v1582
  %1584 = vmatmul.mubr.f32.gmra.mrb[0].mxu0 %v1583
  %v1585 = vpop.f32.mrb[0].mxu0
  %v1586 = vadd.f32 %v1454, %v1585
  %v1587 = vpop.f32.mrb[0].mxu0
  %1588 = vmatprep.mubr.f32.mxu0 0.0
  %v1589 = vand.u32 %v1167, 4294901760
  %v1590 = vsub.f32 %v1167, %v1589
  %1591 = vmatmul.mubr.f32.gmra.mrb[0].mxu0 %v1590
  %v1592 = vpop.f32.mrb[0].mxu0
  %v1593 = vadd.f32 %v1460, %v1592
  %v1594 = vpop.f32.mrb[0].mxu0
  %1595 = vmatprep.mubr.f32.mxu0 0.0
  %v1596 = vand.u32 %v1170, 4294901760
  %v1597 = vsub.f32 %v1170, %v1596
  %1598 = vmatmul.mubr.f32.gmra.mrb[0].mxu0 %v1597
  %v1599 = vpop.f32.mrb[0].mxu0
  %v1600 = vadd.f32 %v1466, %v1599
  %v1601 = vpop.f32.mrb[0].mxu0
  %1602 = vmatprep.mubr.f32.mxu0 0.0
  %v1603 = vand.u32 %v1173, 4294901760
  %v1604 = vsub.f32 %v1173, %v1603
  %1605 = vmatmul.mubr.f32.gmra.mrb[0].mxu0 %v1604
  %v1606 = vpop.f32.mrb[0].mxu0
  %v1607 = vadd.f32 %v1472, %v1606
  %v1608 = vpop.f32.mrb[0].mxu0
  %1609 = vmatprep.mubr.f32.mxu0 0.0
  %v1610 = vand.u32 %v1176, 4294901760
  %v1611 = vsub.f32 %v1176, %v1610
  %1612 = vmatmul.mubr.f32.gmra.mrb[0].mxu0 %v1611
  %v1613 = vpop.f32.mrb[0].mxu0
  %v1614 = vadd.f32 %v1478, %v1613
  %v1615 = vpop.f32.mrb[0].mxu0
  %1616 = vmatprep.mubr.f32.mxu0 0.0
  %v1617 = vand.u32 %v1179, 4294901760
  %v1618 = vsub.f32 %v1179, %v1617
  %1619 = vmatmul.mubr.f32.gmra.mrb[0].mxu0 %v1618
  %v1620 = vpop.f32.mrb[0].mxu0
  %v1621 = vadd.f32 %v1484, %v1620
  %v1622 = vpop.f32.mrb[0].mxu0
  %1623 = vdwg.mxu0
  %1624 = vmatprep.subr.mxu0 0.0
  %v1625 = vand.u32 %v1108, 4294901760
  %1626 = vmatpush1.msra.mxu0 %v1625
  %1627 = vmatprep.subr.mxu0 0.0
  %v1628 = vand.u32 %v1109, 4294901760
  %1629 = vmatpush1.msra.mxu0 %v1628
  %1630 = vmatprep.subr.mxu0 0.0
  %v1631 = vand.u32 %v1110, 4294901760
  %1632 = vmatpush1.msra.mxu0 %v1631
  %1633 = vmatprep.subr.mxu0 0.0
  %v1634 = vand.u32 %v1111, 4294901760
  %1635 = vmatpush1.msra.mxu0 %v1634
  %1636 = vmatprep.subr.mxu0 0.0
  %v1637 = vand.u32 %v1112, 4294901760
  %1638 = vmatpush1.msra.mxu0 %v1637
  %1639 = vmatprep.subr.mxu0 0.0
  %v1640 = vand.u32 %v1113, 4294901760
  %1641 = vmatpush1.msra.mxu0 %v1640
  %1642 = vmatprep.subr.mxu0 0.0
  %v1643 = vand.u32 %v1114, 4294901760
  %1644 = vmatpush1.msra.mxu0 %v1643
  %1645 = vmatprep.subr.mxu0 0.0
  %v1646 = vand.u32 %v1115, 4294901760
  %1647 = vmatpush1.msra.mxu0 %v1646
  %1648 = vmatprep.subr.mxu0 0.0
  %1649 = vmatpush1.msra.mxu0 0.0
  %1650 = vmatprep.subr.mxu0 0.0
  %1651 = vmatpush1.msra.mxu0 0.0
  %1652 = vmatprep.subr.mxu0 0.0
  %1653 = vmatpush1.msra.mxu0 0.0
  %1654 = vmatprep.subr.mxu0 0.0
  %1655 = vmatpush1.msra.mxu0 0.0
  %1656 = vmatprep.subr.mxu0 0.0
  %1657 = vmatpush1.msra.mxu0 0.0
  %1658 = vmatprep.subr.mxu0 0.0
  %1659 = vmatpush1.msra.mxu0 0.0
  %1660 = vmatprep.subr.mxu0 0.0
  %1661 = vmatpush1.msra.mxu0 0.0
  %1662 = vmatprep.subr.mxu0 0.0
  %1663 = vmatpush1.msra.mxu0 0.0
  %1664 = vmatprep.subr.mxu0 0.0
  %1665 = vmatpush1.msra.mxu0 0.0
  %1666 = vmatprep.subr.mxu0 0.0
  %1667 = vmatpush1.msra.mxu0 0.0
  %1668 = vmatprep.subr.mxu0 0.0
  %1669 = vmatpush1.msra.mxu0 0.0
  %1670 = vmatprep.subr.mxu0 0.0
  %1671 = vmatpush1.msra.mxu0 0.0
  %1672 = vmatprep.subr.mxu0 0.0
  %1673 = vmatpush1.msra.mxu0 0.0
  %1674 = vmatprep.subr.mxu0 0.0
  %1675 = vmatpush1.msra.mxu0 0.0
  %1676 = vmatprep.subr.mxu0 0.0
  %1677 = vmatpush1.msra.mxu0 0.0
  %1678 = vmatprep.subr.mxu0 0.0
  %1679 = vmatpush1.msra.mxu0 0.0
  %1680 = vmatprep.subr.mxu0 0.0
  %1681 = vmatpush1.msra.mxu0 0.0
  %1682 = vmatprep.subr.mxu0 0.0
  %1683 = vmatpush1.msra.mxu0 0.0
  %1684 = vmatprep.subr.mxu0 0.0
  %1685 = vmatpush1.msra.mxu0 0.0
  %1686 = vmatprep.subr.mxu0 0.0
  %1687 = vmatpush1.msra.mxu0 0.0
  %1688 = vmatprep.subr.mxu0 0.0
  %1689 = vmatpush1.msra.mxu0 0.0
  %1690 = vmatprep.subr.mxu0 0.0
  %1691 = vmatpush1.msra.mxu0 0.0
  %1692 = vmatprep.subr.mxu0 0.0
  %1693 = vmatpush1.msra.mxu0 0.0
  %1694 = vmatprep.subr.mxu0 0.0
  %1695 = vmatpush1.msra.mxu0 0.0
  %1696 = vmatprep.mubr.f32.mxu0 0.0
  %v1697 = vand.u32 %v1158, 4294901760
  %v1698 = vsub.f32 %v1158, %v1697
  %v1699 = vand.u32 %v1698, 4294901760
  %1700 = vmatmul.mubr.f32.gmra.mrb[0].mxu0 %v1699
  %v1701 = vpop.f32.mrb[0].mxu0
  %v1702 = vadd.f32 %v1572, %v1701
  %v1703 = vpop.f32.mrb[0].mxu0
  %1704 = vmatprep.mubr.f32.mxu0 0.0
  %v1705 = vand.u32 %v1161, 4294901760
  %v1706 = vsub.f32 %v1161, %v1705
  %v1707 = vand.u32 %v1706, 4294901760
  %1708 = vmatmul.mubr.f32.gmra.mrb[0].mxu0 %v1707
  %v1709 = vpop.f32.mrb[0].mxu0
  %v1710 = vadd.f32 %v1579, %v1709
  %v1711 = vpop.f32.mrb[0].mxu0
  %1712 = vmatprep.mubr.f32.mxu0 0.0
  %v1713 = vand.u32 %v1164, 4294901760
  %v1714 = vsub.f32 %v1164, %v1713
  %v1715 = vand.u32 %v1714, 4294901760
  %1716 = vmatmul.mubr.f32.gmra.mrb[0].mxu0 %v1715
  %v1717 = vpop.f32.mrb[0].mxu0
  %v1718 = vadd.f32 %v1586, %v1717
  %v1719 = vpop.f32.mrb[0].mxu0
  %1720 = vmatprep.mubr.f32.mxu0 0.0
  %v1721 = vand.u32 %v1167, 4294901760
  %v1722 = vsub.f32 %v1167, %v1721
  %v1723 = vand.u32 %v1722, 4294901760
  %1724 = vmatmul.mubr.f32.gmra.mrb[0].mxu0 %v1723
  %v1725 = vpop.f32.mrb[0].mxu0
  %v1726 = vadd.f32 %v1593, %v1725
  %v1727 = vpop.f32.mrb[0].mxu0
  %1728 = vmatprep.mubr.f32.mxu0 0.0
  %v1729 = vand.u32 %v1170, 4294901760
  %v1730 = vsub.f32 %v1170, %v1729
  %v1731 = vand.u32 %v1730, 4294901760
  %1732 = vmatmul.mubr.f32.gmra.mrb[0].mxu0 %v1731
  %v1733 = vpop.f32.mrb[0].mxu0
  %v1734 = vadd.f32 %v1600, %v1733
  %v1735 = vpop.f32.mrb[0].mxu0
  %1736 = vmatprep.mubr.f32.mxu0 0.0
  %v1737 = vand.u32 %v1173, 4294901760
  %v1738 = vsub.f32 %v1173, %v1737
  %v1739 = vand.u32 %v1738, 4294901760
  %1740 = vmatmul.mubr.f32.gmra.mrb[0].mxu0 %v1739
  %v1741 = vpop.f32.mrb[0].mxu0
  %v1742 = vadd.f32 %v1607, %v1741
  %v1743 = vpop.f32.mrb[0].mxu0
  %1744 = vmatprep.mubr.f32.mxu0 0.0
  %v1745 = vand.u32 %v1176, 4294901760
  %v1746 = vsub.f32 %v1176, %v1745
  %v1747 = vand.u32 %v1746, 4294901760
  %1748 = vmatmul.mubr.f32.gmra.mrb[0].mxu0 %v1747
  %v1749 = vpop.f32.mrb[0].mxu0
  %v1750 = vadd.f32 %v1614, %v1749
  %v1751 = vpop.f32.mrb[0].mxu0
  %1752 = vmatprep.mubr.f32.mxu0 0.0
  %v1753 = vand.u32 %v1179, 4294901760
  %v1754 = vsub.f32 %v1179, %v1753
  %v1755 = vand.u32 %v1754, 4294901760
  %1756 = vmatmul.mubr.f32.gmra.mrb[0].mxu0 %v1755
  %v1757 = vpop.f32.mrb[0].mxu0
  %v1758 = vadd.f32 %v1621, %v1757
  %v1759 = vpop.f32.mrb[0].mxu0
  %1760 = vdwg.mxu0
  %1761 = vmatprep.subr.mxu0 0.0
  %v1762 = vand.u32 %v1108, 4294901760
  %v1763 = vsub.f32 %v1108, %v1762
  %v1764 = vand.u32 %v1763, 4294901760
  %1765 = vmatpush1.msra.mxu0 %v1764
  %1766 = vmatprep.subr.mxu0 0.0
  %v1767 = vand.u32 %v1109, 4294901760
  %v1768 = vsub.f32 %v1109, %v1767
  %v1769 = vand.u32 %v1768, 4294901760
  %1770 = vmatpush1.msra.mxu0 %v1769
  %1771 = vmatprep.subr.mxu0 0.0
  %v1772 = vand.u32 %v1110, 4294901760
  %v1773 = vsub.f32 %v1110, %v1772
  %v1774 = vand.u32 %v1773, 4294901760
  %1775 = vmatpush1.msra.mxu0 %v1774
  %1776 = vmatprep.subr.mxu0 0.0
  %v1777 = vand.u32 %v1111, 4294901760
  %v1778 = vsub.f32 %v1111, %v1777
  %v1779 = vand.u32 %v1778, 4294901760
  %1780 = vmatpush1.msra.mxu0 %v1779
  %1781 = vmatprep.subr.mxu0 0.0
  %v1782 = vand.u32 %v1112, 4294901760
  %v1783 = vsub.f32 %v1112, %v1782
  %v1784 = vand.u32 %v1783, 4294901760
  %1785 = vmatpush1.msra.mxu0 %v1784
  %1786 = vmatprep.subr.mxu0 0.0
  %v1787 = vand.u32 %v1113, 4294901760
  %v1788 = vsub.f32 %v1113, %v1787
  %v1789 = vand.u32 %v1788, 4294901760
  %1790 = vmatpush1.msra.mxu0 %v1789
  %1791 = vmatprep.subr.mxu0 0.0
  %v1792 = vand.u32 %v1114, 4294901760
  %v1793 = vsub.f32 %v1114, %v1792
  %v1794 = vand.u32 %v1793, 4294901760
  %1795 = vmatpush1.msra.mxu0 %v1794
  %1796 = vmatprep.subr.mxu0 0.0
  %v1797 = vand.u32 %v1115, 4294901760
  %v1798 = vsub.f32 %v1115, %v1797
  %v1799 = vand.u32 %v1798, 4294901760
  %1800 = vmatpush1.msra.mxu0 %v1799
  %1801 = vmatprep.subr.mxu0 0.0
  %1802 = vmatpush1.msra.mxu0 0.0
  %1803 = vmatprep.subr.mxu0 0.0
  %1804 = vmatpush1.msra.mxu0 0.0
  %1805 = vmatprep.subr.mxu0 0.0
  %1806 = vmatpush1.msra.mxu0 0.0
  %1807 = vmatprep.subr.mxu0 0.0
  %1808 = vmatpush1.msra.mxu0 0.0
  %1809 = vmatprep.subr.mxu0 0.0
  %1810 = vmatpush1.msra.mxu0 0.0
  %1811 = vmatprep.subr.mxu0 0.0
  %1812 = vmatpush1.msra.mxu0 0.0
  %1813 = vmatprep.subr.mxu0 0.0
  %1814 = vmatpush1.msra.mxu0 0.0
  %1815 = vmatprep.subr.mxu0 0.0
  %1816 = vmatpush1.msra.mxu0 0.0
  %1817 = vmatprep.subr.mxu0 0.0
  %1818 = vmatpush1.msra.mxu0 0.0
  %1819 = vmatprep.subr.mxu0 0.0
  %1820 = vmatpush1.msra.mxu0 0.0
  %1821 = vmatprep.subr.mxu0 0.0
  %1822 = vmatpush1.msra.mxu0 0.0
  %1823 = vmatprep.subr.mxu0 0.0
  %1824 = vmatpush1.msra.mxu0 0.0
  %1825 = vmatprep.subr.mxu0 0.0
  %1826 = vmatpush1.msra.mxu0 0.0
  %1827 = vmatprep.subr.mxu0 0.0
  %1828 = vmatpush1.msra.mxu0 0.0
  %1829 = vmatprep.subr.mxu0 0.0
  %1830 = vmatpush1.msra.mxu0 0.0
  %1831 = vmatprep.subr.mxu0 0.0
  %1832 = vmatpush1.msra.mxu0 0.0
  %1833 = vmatprep.subr.mxu0 0.0
  %1834 = vmatpush1.msra.mxu0 0.0
  %1835 = vmatprep.subr.mxu0 0.0
  %1836 = vmatpush1.msra.mxu0 0.0
  %1837 = vmatprep.subr.mxu0 0.0
  %1838 = vmatpush1.msra.mxu0 0.0
  %1839 = vmatprep.subr.mxu0 0.0
  %1840 = vmatpush1.msra.mxu0 0.0
  %1841 = vmatprep.subr.mxu0 0.0
  %1842 = vmatpush1.msra.mxu0 0.0
  %1843 = vmatprep.subr.mxu0 0.0
  %1844 = vmatpush1.msra.mxu0 0.0
  %1845 = vmatprep.subr.mxu0 0.0
  %1846 = vmatpush1.msra.mxu0 0.0
  %1847 = vmatprep.subr.mxu0 0.0
  %1848 = vmatpush1.msra.mxu0 0.0
  %1849 = vmatprep.mubr.f32.mxu0 0.0
  %v1850 = vand.u32 %v1158, 4294901760
  %1851 = vmatmul.mubr.f32.gmra.mrb[0].mxu0 %v1850
  %v1852 = vpop.f32.mrb[0].mxu0
  %v1853 = vadd.f32 %v1702, %v1852
  %v1854 = vpop.f32.mrb[0].mxu0
  %1855 = vmatprep.mubr.f32.mxu0 0.0
  %v1856 = vand.u32 %v1161, 4294901760
  %1857 = vmatmul.mubr.f32.gmra.mrb[0].mxu0 %v1856
  %v1858 = vpop.f32.mrb[0].mxu0
  %v1859 = vadd.f32 %v1710, %v1858
  %v1860 = vpop.f32.mrb[0].mxu0
  %1861 = vmatprep.mubr.f32.mxu0 0.0
  %v1862 = vand.u32 %v1164, 4294901760
  %1863 = vmatmul.mubr.f32.gmra.mrb[0].mxu0 %v1862
  %v1864 = vpop.f32.mrb[0].mxu0
  %v1865 = vadd.f32 %v1718, %v1864
  %v1866 = vpop.f32.mrb[0].mxu0
  %1867 = vmatprep.mubr.f32.mxu0 0.0
  %v1868 = vand.u32 %v1167, 4294901760
  %1869 = vmatmul.mubr.f32.gmra.mrb[0].mxu0 %v1868
  %v1870 = vpop.f32.mrb[0].mxu0
  %v1871 = vadd.f32 %v1726, %v1870
  %v1872 = vpop.f32.mrb[0].mxu0
  %1873 = vmatprep.mubr.f32.mxu0 0.0
  %v1874 = vand.u32 %v1170, 4294901760
  %1875 = vmatmul.mubr.f32.gmra.mrb[0].mxu0 %v1874
  %v1876 = vpop.f32.mrb[0].mxu0
  %v1877 = vadd.f32 %v1734, %v1876
  %v1878 = vpop.f32.mrb[0].mxu0
  %1879 = vmatprep.mubr.f32.mxu0 0.0
  %v1880 = vand.u32 %v1173, 4294901760
  %1881 = vmatmul.mubr.f32.gmra.mrb[0].mxu0 %v1880
  %v1882 = vpop.f32.mrb[0].mxu0
  %v1883 = vadd.f32 %v1742, %v1882
  %v1884 = vpop.f32.mrb[0].mxu0
  %1885 = vmatprep.mubr.f32.mxu0 0.0
  %v1886 = vand.u32 %v1176, 4294901760
  %1887 = vmatmul.mubr.f32.gmra.mrb[0].mxu0 %v1886
  %v1888 = vpop.f32.mrb[0].mxu0
  %v1889 = vadd.f32 %v1750, %v1888
  %v1890 = vpop.f32.mrb[0].mxu0
  %1891 = vmatprep.mubr.f32.mxu0 0.0
  %v1892 = vand.u32 %v1179, 4294901760
  %1893 = vmatmul.mubr.f32.gmra.mrb[0].mxu0 %v1892
  %v1894 = vpop.f32.mrb[0].mxu0
  %v1895 = vadd.f32 %v1758, %v1894
  %v1896 = vpop.f32.mrb[0].mxu0
  %1897 = vdwg.mxu0
  %1898 = vmatprep.subr.mxu0 0.0
  %v1899 = vand.u32 %v1108, 4294901760
  %1900 = vmatpush1.msra.mxu0 %v1899
  %1901 = vmatprep.subr.mxu0 0.0
  %v1902 = vand.u32 %v1109, 4294901760
  %1903 = vmatpush1.msra.mxu0 %v1902
  %1904 = vmatprep.subr.mxu0 0.0
  %v1905 = vand.u32 %v1110, 4294901760
  %1906 = vmatpush1.msra.mxu0 %v1905
  %1907 = vmatprep.subr.mxu0 0.0
  %v1908 = vand.u32 %v1111, 4294901760
  %1909 = vmatpush1.msra.mxu0 %v1908
  %1910 = vmatprep.subr.mxu0 0.0
  %v1911 = vand.u32 %v1112, 4294901760
  %1912 = vmatpush1.msra.mxu0 %v1911
  %1913 = vmatprep.subr.mxu0 0.0
  %v1914 = vand.u32 %v1113, 4294901760
  %1915 = vmatpush1.msra.mxu0 %v1914
  %1916 = vmatprep.subr.mxu0 0.0
  %v1917 = vand.u32 %v1114, 4294901760
  %1918 = vmatpush1.msra.mxu0 %v1917
  %1919 = vmatprep.subr.mxu0 0.0
  %v1920 = vand.u32 %v1115, 4294901760
  %1921 = vmatpush1.msra.mxu0 %v1920
  %1922 = vmatprep.subr.mxu0 0.0
  %1923 = vmatpush1.msra.mxu0 0.0
  %1924 = vmatprep.subr.mxu0 0.0
  %1925 = vmatpush1.msra.mxu0 0.0
  %1926 = vmatprep.subr.mxu0 0.0
  %1927 = vmatpush1.msra.mxu0 0.0
  %1928 = vmatprep.subr.mxu0 0.0
  %1929 = vmatpush1.msra.mxu0 0.0
  %1930 = vmatprep.subr.mxu0 0.0
  %1931 = vmatpush1.msra.mxu0 0.0
  %1932 = vmatprep.subr.mxu0 0.0
  %1933 = vmatpush1.msra.mxu0 0.0
  %1934 = vmatprep.subr.mxu0 0.0
  %1935 = vmatpush1.msra.mxu0 0.0
  %1936 = vmatprep.subr.mxu0 0.0
  %1937 = vmatpush1.msra.mxu0 0.0
  %1938 = vmatprep.subr.mxu0 0.0
  %1939 = vmatpush1.msra.mxu0 0.0
  %1940 = vmatprep.subr.mxu0 0.0
  %1941 = vmatpush1.msra.mxu0 0.0
  %1942 = vmatprep.subr.mxu0 0.0
  %1943 = vmatpush1.msra.mxu0 0.0
  %1944 = vmatprep.subr.mxu0 0.0
  %1945 = vmatpush1.msra.mxu0 0.0
  %1946 = vmatprep.subr.mxu0 0.0
  %1947 = vmatpush1.msra.mxu0 0.0
  %1948 = vmatprep.subr.mxu0 0.0
  %1949 = vmatpush1.msra.mxu0 0.0
  %1950 = vmatprep.subr.mxu0 0.0
  %1951 = vmatpush1.msra.mxu0 0.0
  %1952 = vmatprep.subr.mxu0 0.0
  %1953 = vmatpush1.msra.mxu0 0.0
  %1954 = vmatprep.subr.mxu0 0.0
  %1955 = vmatpush1.msra.mxu0 0.0
  %1956 = vmatprep.subr.mxu0 0.0
  %1957 = vmatpush1.msra.mxu0 0.0
  %1958 = vmatprep.subr.mxu0 0.0
  %1959 = vmatpush1.msra.mxu0 0.0
  %1960 = vmatprep.subr.mxu0 0.0
  %1961 = vmatpush1.msra.mxu0 0.0
  %1962 = vmatprep.subr.mxu0 0.0
  %1963 = vmatpush1.msra.mxu0 0.0
  %1964 = vmatprep.subr.mxu0 0.0
  %1965 = vmatpush1.msra.mxu0 0.0
  %1966 = vmatprep.subr.mxu0 0.0
  %1967 = vmatpush1.msra.mxu0 0.0
  %1968 = vmatprep.subr.mxu0 0.0
  %1969 = vmatpush1.msra.mxu0 0.0
  %1970 = vmatprep.mubr.f32.mxu0 0.0
  %v1971 = vand.u32 %v1158, 4294901760
  %1972 = vmatmul.mubr.f32.gmra.mrb[0].mxu0 %v1971
  %v1973 = vpop.f32.mrb[0].mxu0
  %v1974 = vadd.f32 %v1853, %v1973
  %v1975 = vpop.f32.mrb[0].mxu0
  %1976 = vmatprep.mubr.f32.mxu0 0.0
  %v1977 = vand.u32 %v1161, 4294901760
  %1978 = vmatmul.mubr.f32.gmra.mrb[0].mxu0 %v1977
  %v1979 = vpop.f32.mrb[0].mxu0
  %v1980 = vadd.f32 %v1859, %v1979
  %v1981 = vpop.f32.mrb[0].mxu0
  %1982 = vmatprep.mubr.f32.mxu0 0.0
  %v1983 = vand.u32 %v1164, 4294901760
  %1984 = vmatmul.mubr.f32.gmra.mrb[0].mxu0 %v1983
  %v1985 = vpop.f32.mrb[0].mxu0
  %v1986 = vadd.f32 %v1865, %v1985
  %v1987 = vpop.f32.mrb[0].mxu0
  %1988 = vmatprep.mubr.f32.mxu0 0.0
  %v1989 = vand.u32 %v1167, 4294901760
  %1990 = vmatmul.mubr.f32.gmra.mrb[0].mxu0 %v1989
  %v1991 = vpop.f32.mrb[0].mxu0
  %v1992 = vadd.f32 %v1871, %v1991
  %v1993 = vpop.f32.mrb[0].mxu0
  %1994 = vmatprep.mubr.f32.mxu0 0.0
  %v1995 = vand.u32 %v1170, 4294901760
  %1996 = vmatmul.mubr.f32.gmra.mrb[0].mxu0 %v1995
  %v1997 = vpop.f32.mrb[0].mxu0
  %v1998 = vadd.f32 %v1877, %v1997
  %v1999 = vpop.f32.mrb[0].mxu0
  %2000 = vmatprep.mubr.f32.mxu0 0.0
  %v2001 = vand.u32 %v1173, 4294901760
  %2002 = vmatmul.mubr.f32.gmra.mrb[0].mxu0 %v2001
  %v2003 = vpop.f32.mrb[0].mxu0
  %v2004 = vadd.f32 %v1883, %v2003
  %v2005 = vpop.f32.mrb[0].mxu0
  %2006 = vmatprep.mubr.f32.mxu0 0.0
  %v2007 = vand.u32 %v1176, 4294901760
  %2008 = vmatmul.mubr.f32.gmra.mrb[0].mxu0 %v2007
  %v2009 = vpop.f32.mrb[0].mxu0
  %v2010 = vadd.f32 %v1889, %v2009
  %v2011 = vpop.f32.mrb[0].mxu0
  %2012 = vmatprep.mubr.f32.mxu0 0.0
  %v2013 = vand.u32 %v1179, 4294901760
  %2014 = vmatmul.mubr.f32.gmra.mrb[0].mxu0 %v2013
  %v2015 = vpop.f32.mrb[0].mxu0
  %v2016 = vadd.f32 %v1895, %v2015
  %v2017 = vpop.f32.mrb[0].mxu0
  %2018 = vdwg.mxu0
  %v2019 = vmax.f32 %v1974, 0.0
  %v2020 = vmax.f32 %v1980, 0.0
  %v2021 = vmax.f32 %v1986, 0.0
  %v2022 = vmax.f32 %v1992, 0.0
  %v2023 = vmax.f32 %v1998, 0.0
  %v2024 = vmax.f32 %v2004, 0.0
  %v2025 = vmax.f32 %v2010, 0.0
  %v2026 = vmax.f32 %v2016, 0.0
  %v2027 = vld [vmem:[%s3] sm:$0x1]
  %2029 = vset.pattern.permute.xlu0 2
  %2030 = vperm.xlu0 %2029, %v28
  %v2031 = vpop.permute.xlu0 %2030
  %v2034 = vsel %vm1156, %v2027, 0
  %2036 = vmatprep.subr.mxu0 0.0
  %v2037 = vand.u32 %v2019, 4294901760
  %2038 = vmatpush1.msra.mxu0 %v2037
  %2039 = vmatprep.subr.mxu0 0.0
  %v2040 = vand.u32 %v2020, 4294901760
  %2041 = vmatpush1.msra.mxu0 %v2040
  %2042 = vmatprep.subr.mxu0 0.0
  %v2043 = vand.u32 %v2021, 4294901760
  %2044 = vmatpush1.msra.mxu0 %v2043
  %2045 = vmatprep.subr.mxu0 0.0
  %v2046 = vand.u32 %v2022, 4294901760
  %2047 = vmatpush1.msra.mxu0 %v2046
  %2048 = vmatprep.subr.mxu0 0.0
  %v2049 = vand.u32 %v2023, 4294901760
  %2050 = vmatpush1.msra.mxu0 %v2049
  %2051 = vmatprep.subr.mxu0 0.0
  %v2052 = vand.u32 %v2024, 4294901760
  %2053 = vmatpush1.msra.mxu0 %v2052
  %2054 = vmatprep.subr.mxu0 0.0
  %v2055 = vand.u32 %v2025, 4294901760
  %2056 = vmatpush1.msra.mxu0 %v2055
  %2057 = vmatprep.subr.mxu0 0.0
  %v2058 = vand.u32 %v2026, 4294901760
  %2059 = vmatpush1.msra.mxu0 %v2058
  %2060 = vmatprep.subr.mxu0 0.0
  %2061 = vmatpush1.msra.mxu0 0.0
  %2062 = vmatprep.subr.mxu0 0.0
  %2063 = vmatpush1.msra.mxu0 0.0
  %2064 = vmatprep.subr.mxu0 0.0
  %2065 = vmatpush1.msra.mxu0 0.0
  %2066 = vmatprep.subr.mxu0 0.0
  %2067 = vmatpush1.msra.mxu0 0.0
  %2068 = vmatprep.subr.mxu0 0.0
  %2069 = vmatpush1.msra.mxu0 0.0
  %2070 = vmatprep.subr.mxu0 0.0
  %2071 = vmatpush1.msra.mxu0 0.0
  %2072 = vmatprep.subr.mxu0 0.0
  %2073 = vmatpush1.msra.mxu0 0.0
  %2074 = vmatprep.subr.mxu0 0.0
  %2075 = vmatpush1.msra.mxu0 0.0
  %2076 = vmatprep.subr.mxu0 0.0
  %2077 = vmatpush1.msra.mxu0 0.0
  %2078 = vmatprep.subr.mxu0 0.0
  %2079 = vmatpush1.msra.mxu0 0.0
  %2080 = vmatprep.subr.mxu0 0.0
  %2081 = vmatpush1.msra.mxu0 0.0
  %2082 = vmatprep.subr.mxu0 0.0
  %2083 = vmatpush1.msra.mxu0 0.0
  %2084 = vmatprep.subr.mxu0 0.0
  %2085 = vmatpush1.msra.mxu0 0.0
  %2086 = vmatprep.subr.mxu0 0.0
  %2087 = vmatpush1.msra.mxu0 0.0
  %2088 = vmatprep.subr.mxu0 0.0
  %2089 = vmatpush1.msra.mxu0 0.0
  %2090 = vmatprep.subr.mxu0 0.0
  %2091 = vmatpush1.msra.mxu0 0.0
  %2092 = vmatprep.subr.mxu0 0.0
  %2093 = vmatpush1.msra.mxu0 0.0
  %2094 = vmatprep.subr.mxu0 0.0
  %2095 = vmatpush1.msra.mxu0 0.0
  %2096 = vmatprep.subr.mxu0 0.0
  %2097 = vmatpush1.msra.mxu0 0.0
  %2098 = vmatprep.subr.mxu0 0.0
  %2099 = vmatpush1.msra.mxu0 0.0
  %2100 = vmatprep.subr.mxu0 0.0
  %2101 = vmatpush1.msra.mxu0 0.0
  %2102 = vmatprep.subr.mxu0 0.0
  %2103 = vmatpush1.msra.mxu0 0.0
  %2104 = vmatprep.subr.mxu0 0.0
  %2105 = vmatpush1.msra.mxu0 0.0
  %2106 = vmatprep.subr.mxu0 0.0
  %2107 = vmatpush1.msra.mxu0 0.0
  %2108 = vmatprep.mubr.f32.mxu0 0.0
  %v2109 = vand.u32 %v2034, 4294901760
  %v2110 = vsub.f32 %v2034, %v2109
  %v2111 = vand.u32 %v2110, 4294901760
  %v2112 = vsub.f32 %v2110, %v2111
  %v2113 = vand.u32 %v2112, 4294901760
  %2114 = vmatmul.mubr.f32.gmra.mrb[0].mxu0 %v2113
  %v2115 = vpop.f32.mrb[0].mxu0
  %v2116 = vadd.f32 %v2031, %v2115
  %v2117 = vpop.f32.mrb[0].mxu0
  %2118 = vdwg.mxu0
  %2119 = vmatprep.subr.mxu0 0.0
  %v2120 = vand.u32 %v2019, 4294901760
  %v2121 = vsub.f32 %v2019, %v2120
  %v2122 = vand.u32 %v2121, 4294901760
  %v2123 = vsub.f32 %v2121, %v2122
  %v2124 = vand.u32 %v2123, 4294901760
  %2125 = vmatpush1.msra.mxu0 %v2124
  %2126 = vmatprep.subr.mxu0 0.0
  %v2127 = vand.u32 %v2020, 4294901760
  %v2128 = vsub.f32 %v2020, %v2127
  %v2129 = vand.u32 %v2128, 4294901760
  %v2130 = vsub.f32 %v2128, %v2129
  %v2131 = vand.u32 %v2130, 4294901760
  %2132 = vmatpush1.msra.mxu0 %v2131
  %2133 = vmatprep.subr.mxu0 0.0
  %v2134 = vand.u32 %v2021, 4294901760
  %v2135 = vsub.f32 %v2021, %v2134
  %v2136 = vand.u32 %v2135, 4294901760
  %v2137 = vsub.f32 %v2135, %v2136
  %v2138 = vand.u32 %v2137, 4294901760
  %2139 = vmatpush1.msra.mxu0 %v2138
  %2140 = vmatprep.subr.mxu0 0.0
  %v2141 = vand.u32 %v2022, 4294901760
  %v2142 = vsub.f32 %v2022, %v2141
  %v2143 = vand.u32 %v2142, 4294901760
  %v2144 = vsub.f32 %v2142, %v2143
  %v2145 = vand.u32 %v2144, 4294901760
  %2146 = vmatpush1.msra.mxu0 %v2145
  %2147 = vmatprep.subr.mxu0 0.0
  %v2148 = vand.u32 %v2023, 4294901760
  %v2149 = vsub.f32 %v2023, %v2148
  %v2150 = vand.u32 %v2149, 4294901760
  %v2151 = vsub.f32 %v2149, %v2150
  %v2152 = vand.u32 %v2151, 4294901760
  %2153 = vmatpush1.msra.mxu0 %v2152
  %2154 = vmatprep.subr.mxu0 0.0
  %v2155 = vand.u32 %v2024, 4294901760
  %v2156 = vsub.f32 %v2024, %v2155
  %v2157 = vand.u32 %v2156, 4294901760
  %v2158 = vsub.f32 %v2156, %v2157
  %v2159 = vand.u32 %v2158, 4294901760
  %2160 = vmatpush1.msra.mxu0 %v2159
  %2161 = vmatprep.subr.mxu0 0.0
  %v2162 = vand.u32 %v2025, 4294901760
  %v2163 = vsub.f32 %v2025, %v2162
  %v2164 = vand.u32 %v2163, 4294901760
  %v2165 = vsub.f32 %v2163, %v2164
  %v2166 = vand.u32 %v2165, 4294901760
  %2167 = vmatpush1.msra.mxu0 %v2166
  %2168 = vmatprep.subr.mxu0 0.0
  %v2169 = vand.u32 %v2026, 4294901760
  %v2170 = vsub.f32 %v2026, %v2169
  %v2171 = vand.u32 %v2170, 4294901760
  %v2172 = vsub.f32 %v2170, %v2171
  %v2173 = vand.u32 %v2172, 4294901760
  %2174 = vmatpush1.msra.mxu0 %v2173
  %2175 = vmatprep.subr.mxu0 0.0
  %2176 = vmatpush1.msra.mxu0 0.0
  %2177 = vmatprep.subr.mxu0 0.0
  %2178 = vmatpush1.msra.mxu0 0.0
  %2179 = vmatprep.subr.mxu0 0.0
  %2180 = vmatpush1.msra.mxu0 0.0
  %2181 = vmatprep.subr.mxu0 0.0
  %2182 = vmatpush1.msra.mxu0 0.0
  %2183 = vmatprep.subr.mxu0 0.0
  %2184 = vmatpush1.msra.mxu0 0.0
  %2185 = vmatprep.subr.mxu0 0.0
  %2186 = vmatpush1.msra.mxu0 0.0
  %2187 = vmatprep.subr.mxu0 0.0
  %2188 = vmatpush1.msra.mxu0 0.0
  %2189 = vmatprep.subr.mxu0 0.0
  %2190 = vmatpush1.msra.mxu0 0.0
  %2191 = vmatprep.subr.mxu0 0.0
  %2192 = vmatpush1.msra.mxu0 0.0
  %2193 = vmatprep.subr.mxu0 0.0
  %2194 = vmatpush1.msra.mxu0 0.0
  %2195 = vmatprep.subr.mxu0 0.0
  %2196 = vmatpush1.msra.mxu0 0.0
  %2197 = vmatprep.subr.mxu0 0.0
  %2198 = vmatpush1.msra.mxu0 0.0
  %2199 = vmatprep.subr.mxu0 0.0
  %2200 = vmatpush1.msra.mxu0 0.0
  %2201 = vmatprep.subr.mxu0 0.0
  %2202 = vmatpush1.msra.mxu0 0.0
  %2203 = vmatprep.subr.mxu0 0.0
  %2204 = vmatpush1.msra.mxu0 0.0
  %2205 = vmatprep.subr.mxu0 0.0
  %2206 = vmatpush1.msra.mxu0 0.0
  %2207 = vmatprep.subr.mxu0 0.0
  %2208 = vmatpush1.msra.mxu0 0.0
  %2209 = vmatprep.subr.mxu0 0.0
  %2210 = vmatpush1.msra.mxu0 0.0
  %2211 = vmatprep.subr.mxu0 0.0
  %2212 = vmatpush1.msra.mxu0 0.0
  %2213 = vmatprep.subr.mxu0 0.0
  %2214 = vmatpush1.msra.mxu0 0.0
  %2215 = vmatprep.subr.mxu0 0.0
  %2216 = vmatpush1.msra.mxu0 0.0
  %2217 = vmatprep.subr.mxu0 0.0
  %2218 = vmatpush1.msra.mxu0 0.0
  %2219 = vmatprep.subr.mxu0 0.0
  %2220 = vmatpush1.msra.mxu0 0.0
  %2221 = vmatprep.subr.mxu0 0.0
  %2222 = vmatpush1.msra.mxu0 0.0
  %2223 = vmatprep.mubr.f32.mxu0 0.0
  %v2224 = vand.u32 %v2034, 4294901760
  %2225 = vmatmul.mubr.f32.gmra.mrb[0].mxu0 %v2224
  %v2226 = vpop.f32.mrb[0].mxu0
  %v2227 = vadd.f32 %v2116, %v2226
  %v2228 = vpop.f32.mrb[0].mxu0
  %2229 = vdwg.mxu0
  %2230 = vmatprep.subr.mxu0 0.0
  %v2231 = vand.u32 %v2019, 4294901760
  %v2232 = vsub.f32 %v2019, %v2231
  %2233 = vmatpush1.msra.mxu0 %v2232
  %2234 = vmatprep.subr.mxu0 0.0
  %v2235 = vand.u32 %v2020, 4294901760
  %v2236 = vsub.f32 %v2020, %v2235
  %2237 = vmatpush1.msra.mxu0 %v2236
  %2238 = vmatprep.subr.mxu0 0.0
  %v2239 = vand.u32 %v2021, 4294901760
  %v2240 = vsub.f32 %v2021, %v2239
  %2241 = vmatpush1.msra.mxu0 %v2240
  %2242 = vmatprep.subr.mxu0 0.0
  %v2243 = vand.u32 %v2022, 4294901760
  %v2244 = vsub.f32 %v2022, %v2243
  %2245 = vmatpush1.msra.mxu0 %v2244
  %2246 = vmatprep.subr.mxu0 0.0
  %v2247 = vand.u32 %v2023, 4294901760
  %v2248 = vsub.f32 %v2023, %v2247
  %2249 = vmatpush1.msra.mxu0 %v2248
  %2250 = vmatprep.subr.mxu0 0.0
  %v2251 = vand.u32 %v2024, 4294901760
  %v2252 = vsub.f32 %v2024, %v2251
  %2253 = vmatpush1.msra.mxu0 %v2252
  %2254 = vmatprep.subr.mxu0 0.0
  %v2255 = vand.u32 %v2025, 4294901760
  %v2256 = vsub.f32 %v2025, %v2255
  %2257 = vmatpush1.msra.mxu0 %v2256
  %2258 = vmatprep.subr.mxu0 0.0
  %v2259 = vand.u32 %v2026, 4294901760
  %v2260 = vsub.f32 %v2026, %v2259
  %2261 = vmatpush1.msra.mxu0 %v2260
  %2262 = vmatprep.subr.mxu0 0.0
  %2263 = vmatpush1.msra.mxu0 0.0
  %2264 = vmatprep.subr.mxu0 0.0
  %2265 = vmatpush1.msra.mxu0 0.0
  %2266 = vmatprep.subr.mxu0 0.0
  %2267 = vmatpush1.msra.mxu0 0.0
  %2268 = vmatprep.subr.mxu0 0.0
  %2269 = vmatpush1.msra.mxu0 0.0
  %2270 = vmatprep.subr.mxu0 0.0
  %2271 = vmatpush1.msra.mxu0 0.0
  %2272 = vmatprep.subr.mxu0 0.0
  %2273 = vmatpush1.msra.mxu0 0.0
  %2274 = vmatprep.subr.mxu0 0.0
  %2275 = vmatpush1.msra.mxu0 0.0
  %2276 = vmatprep.subr.mxu0 0.0
  %2277 = vmatpush1.msra.mxu0 0.0
  %2278 = vmatprep.subr.mxu0 0.0
  %2279 = vmatpush1.msra.mxu0 0.0
  %2280 = vmatprep.subr.mxu0 0.0
  %2281 = vmatpush1.msra.mxu0 0.0
  %2282 = vmatprep.subr.mxu0 0.0
  %2283 = vmatpush1.msra.mxu0 0.0
  %2284 = vmatprep.subr.mxu0 0.0
  %2285 = vmatpush1.msra.mxu0 0.0
  %2286 = vmatprep.subr.mxu0 0.0
  %2287 = vmatpush1.msra.mxu0 0.0
  %2288 = vmatprep.subr.mxu0 0.0
  %2289 = vmatpush1.msra.mxu0 0.0
  %2290 = vmatprep.subr.mxu0 0.0
  %2291 = vmatpush1.msra.mxu0 0.0
  %2292 = vmatprep.subr.mxu0 0.0
  %2293 = vmatpush1.msra.mxu0 0.0
  %2294 = vmatprep.subr.mxu0 0.0
  %2295 = vmatpush1.msra.mxu0 0.0
  %2296 = vmatprep.subr.mxu0 0.0
  %2297 = vmatpush1.msra.mxu0 0.0
  %2298 = vmatprep.subr.mxu0 0.0
  %2299 = vmatpush1.msra.mxu0 0.0
  %2300 = vmatprep.subr.mxu0 0.0
  %2301 = vmatpush1.msra.mxu0 0.0
  %2302 = vmatprep.subr.mxu0 0.0
  %2303 = vmatpush1.msra.mxu0 0.0
  %2304 = vmatprep.subr.mxu0 0.0
  %2305 = vmatpush1.msra.mxu0 0.0
  %2306 = vmatprep.subr.mxu0 0.0
  %2307 = vmatpush1.msra.mxu0 0.0
  %2308 = vmatprep.subr.mxu0 0.0
  %2309 = vmatpush1.msra.mxu0 0.0
  %2310 = vmatprep.mubr.f32.mxu0 0.0
  %v2311 = vand.u32 %v2034, 4294901760
  %v2312 = vsub.f32 %v2034, %v2311
  %2313 = vmatmul.mubr.f32.gmra.mrb[0].mxu0 %v2312
  %v2314 = vpop.f32.mrb[0].mxu0
  %v2315 = vadd.f32 %v2227, %v2314
  %v2316 = vpop.f32.mrb[0].mxu0
  %2317 = vdwg.mxu0
  %2318 = vmatprep.subr.mxu0 0.0
  %v2319 = vand.u32 %v2019, 4294901760
  %2320 = vmatpush1.msra.mxu0 %v2319
  %2321 = vmatprep.subr.mxu0 0.0
  %v2322 = vand.u32 %v2020, 4294901760
  %2323 = vmatpush1.msra.mxu0 %v2322
  %2324 = vmatprep.subr.mxu0 0.0
  %v2325 = vand.u32 %v2021, 4294901760
  %2326 = vmatpush1.msra.mxu0 %v2325
  %2327 = vmatprep.subr.mxu0 0.0
  %v2328 = vand.u32 %v2022, 4294901760
  %2329 = vmatpush1.msra.mxu0 %v2328
  %2330 = vmatprep.subr.mxu0 0.0
  %v2331 = vand.u32 %v2023, 4294901760
  %2332 = vmatpush1.msra.mxu0 %v2331
  %2333 = vmatprep.subr.mxu0 0.0
  %v2334 = vand.u32 %v2024, 4294901760
  %2335 = vmatpush1.msra.mxu0 %v2334
  %2336 = vmatprep.subr.mxu0 0.0
  %v2337 = vand.u32 %v2025, 4294901760
  %2338 = vmatpush1.msra.mxu0 %v2337
  %2339 = vmatprep.subr.mxu0 0.0
  %v2340 = vand.u32 %v2026, 4294901760
  %2341 = vmatpush1.msra.mxu0 %v2340
  %2342 = vmatprep.subr.mxu0 0.0
  %2343 = vmatpush1.msra.mxu0 0.0
  %2344 = vmatprep.subr.mxu0 0.0
  %2345 = vmatpush1.msra.mxu0 0.0
  %2346 = vmatprep.subr.mxu0 0.0
  %2347 = vmatpush1.msra.mxu0 0.0
  %2348 = vmatprep.subr.mxu0 0.0
  %2349 = vmatpush1.msra.mxu0 0.0
  %2350 = vmatprep.subr.mxu0 0.0
  %2351 = vmatpush1.msra.mxu0 0.0
  %2352 = vmatprep.subr.mxu0 0.0
  %2353 = vmatpush1.msra.mxu0 0.0
  %2354 = vmatprep.subr.mxu0 0.0
  %2355 = vmatpush1.msra.mxu0 0.0
  %2356 = vmatprep.subr.mxu0 0.0
  %2357 = vmatpush1.msra.mxu0 0.0
  %2358 = vmatprep.subr.mxu0 0.0
  %2359 = vmatpush1.msra.mxu0 0.0
  %2360 = vmatprep.subr.mxu0 0.0
  %2361 = vmatpush1.msra.mxu0 0.0
  %2362 = vmatprep.subr.mxu0 0.0
  %2363 = vmatpush1.msra.mxu0 0.0
  %2364 = vmatprep.subr.mxu0 0.0
  %2365 = vmatpush1.msra.mxu0 0.0
  %2366 = vmatprep.subr.mxu0 0.0
  %2367 = vmatpush1.msra.mxu0 0.0
  %2368 = vmatprep.subr.mxu0 0.0
  %2369 = vmatpush1.msra.mxu0 0.0
  %2370 = vmatprep.subr.mxu0 0.0
  %2371 = vmatpush1.msra.mxu0 0.0
  %2372 = vmatprep.subr.mxu0 0.0
  %2373 = vmatpush1.msra.mxu0 0.0
  %2374 = vmatprep.subr.mxu0 0.0
  %2375 = vmatpush1.msra.mxu0 0.0
  %2376 = vmatprep.subr.mxu0 0.0
  %2377 = vmatpush1.msra.mxu0 0.0
  %2378 = vmatprep.subr.mxu0 0.0
  %2379 = vmatpush1.msra.mxu0 0.0
  %2380 = vmatprep.subr.mxu0 0.0
  %2381 = vmatpush1.msra.mxu0 0.0
  %2382 = vmatprep.subr.mxu0 0.0
  %2383 = vmatpush1.msra.mxu0 0.0
  %2384 = vmatprep.subr.mxu0 0.0
  %2385 = vmatpush1.msra.mxu0 0.0
  %2386 = vmatprep.subr.mxu0 0.0
  %2387 = vmatpush1.msra.mxu0 0.0
  %2388 = vmatprep.subr.mxu0 0.0
  %2389 = vmatpush1.msra.mxu0 0.0
  %2390 = vmatprep.mubr.f32.mxu0 0.0
  %v2391 = vand.u32 %v2034, 4294901760
  %v2392 = vsub.f32 %v2034, %v2391
  %v2393 = vand.u32 %v2392, 4294901760
  %2394 = vmatmul.mubr.f32.gmra.mrb[0].mxu0 %v2393
  %v2395 = vpop.f32.mrb[0].mxu0
  %v2396 = vadd.f32 %v2315, %v2395
  %v2397 = vpop.f32.mrb[0].mxu0
  %2398 = vdwg.mxu0
  %2399 = vmatprep.subr.mxu0 0.0
  %v2400 = vand.u32 %v2019, 4294901760
  %v2401 = vsub.f32 %v2019, %v2400
  %v2402 = vand.u32 %v2401, 4294901760
  %2403 = vmatpush1.msra.mxu0 %v2402
  %2404 = vmatprep.subr.mxu0 0.0
  %v2405 = vand.u32 %v2020, 4294901760
  %v2406 = vsub.f32 %v2020, %v2405
  %v2407 = vand.u32 %v2406, 4294901760
  %2408 = vmatpush1.msra.mxu0 %v2407
  %2409 = vmatprep.subr.mxu0 0.0
  %v2410 = vand.u32 %v2021, 4294901760
  %v2411 = vsub.f32 %v2021, %v2410
  %v2412 = vand.u32 %v2411, 4294901760
  %2413 = vmatpush1.msra.mxu0 %v2412
  %2414 = vmatprep.subr.mxu0 0.0
  %v2415 = vand.u32 %v2022, 4294901760
  %v2416 = vsub.f32 %v2022, %v2415
  %v2417 = vand.u32 %v2416, 4294901760
  %2418 = vmatpush1.msra.mxu0 %v2417
  %2419 = vmatprep.subr.mxu0 0.0
  %v2420 = vand.u32 %v2023, 4294901760
  %v2421 = vsub.f32 %v2023, %v2420
  %v2422 = vand.u32 %v2421, 4294901760
  %2423 = vmatpush1.msra.mxu0 %v2422
  %2424 = vmatprep.subr.mxu0 0.0
  %v2425 = vand.u32 %v2024, 4294901760
  %v2426 = vsub.f32 %v2024, %v2425
  %v2427 = vand.u32 %v2426, 4294901760
  %2428 = vmatpush1.msra.mxu0 %v2427
  %2429 = vmatprep.subr.mxu0 0.0
  %v2430 = vand.u32 %v2025, 4294901760
  %v2431 = vsub.f32 %v2025, %v2430
  %v2432 = vand.u32 %v2431, 4294901760
  %2433 = vmatpush1.msra.mxu0 %v2432
  %2434 = vmatprep.subr.mxu0 0.0
  %v2435 = vand.u32 %v2026, 4294901760
  %v2436 = vsub.f32 %v2026, %v2435
  %v2437 = vand.u32 %v2436, 4294901760
  %2438 = vmatpush1.msra.mxu0 %v2437
  %2439 = vmatprep.subr.mxu0 0.0
  %2440 = vmatpush1.msra.mxu0 0.0
  %2441 = vmatprep.subr.mxu0 0.0
  %2442 = vmatpush1.msra.mxu0 0.0
  %2443 = vmatprep.subr.mxu0 0.0
  %2444 = vmatpush1.msra.mxu0 0.0
  %2445 = vmatprep.subr.mxu0 0.0
  %2446 = vmatpush1.msra.mxu0 0.0
  %2447 = vmatprep.subr.mxu0 0.0
  %2448 = vmatpush1.msra.mxu0 0.0
  %2449 = vmatprep.subr.mxu0 0.0
  %2450 = vmatpush1.msra.mxu0 0.0
  %2451 = vmatprep.subr.mxu0 0.0
  %2452 = vmatpush1.msra.mxu0 0.0
  %2453 = vmatprep.subr.mxu0 0.0
  %2454 = vmatpush1.msra.mxu0 0.0
  %2455 = vmatprep.subr.mxu0 0.0
  %2456 = vmatpush1.msra.mxu0 0.0
  %2457 = vmatprep.subr.mxu0 0.0
  %2458 = vmatpush1.msra.mxu0 0.0
  %2459 = vmatprep.subr.mxu0 0.0
  %2460 = vmatpush1.msra.mxu0 0.0
  %2461 = vmatprep.subr.mxu0 0.0
  %2462 = vmatpush1.msra.mxu0 0.0
  %2463 = vmatprep.subr.mxu0 0.0
  %2464 = vmatpush1.msra.mxu0 0.0
  %2465 = vmatprep.subr.mxu0 0.0
  %2466 = vmatpush1.msra.mxu0 0.0
  %2467 = vmatprep.subr.mxu0 0.0
  %2468 = vmatpush1.msra.mxu0 0.0
  %2469 = vmatprep.subr.mxu0 0.0
  %2470 = vmatpush1.msra.mxu0 0.0
  %2471 = vmatprep.subr.mxu0 0.0
  %2472 = vmatpush1.msra.mxu0 0.0
  %2473 = vmatprep.subr.mxu0 0.0
  %2474 = vmatpush1.msra.mxu0 0.0
  %2475 = vmatprep.subr.mxu0 0.0
  %2476 = vmatpush1.msra.mxu0 0.0
  %2477 = vmatprep.subr.mxu0 0.0
  %2478 = vmatpush1.msra.mxu0 0.0
  %2479 = vmatprep.subr.mxu0 0.0
  %2480 = vmatpush1.msra.mxu0 0.0
  %2481 = vmatprep.subr.mxu0 0.0
  %2482 = vmatpush1.msra.mxu0 0.0
  %2483 = vmatprep.subr.mxu0 0.0
  %2484 = vmatpush1.msra.mxu0 0.0
  %2485 = vmatprep.subr.mxu0 0.0
  %2486 = vmatpush1.msra.mxu0 0.0
  %2487 = vmatprep.mubr.f32.mxu0 0.0
  %v2488 = vand.u32 %v2034, 4294901760
  %2489 = vmatmul.mubr.f32.gmra.mrb[0].mxu0 %v2488
  %v2490 = vpop.f32.mrb[0].mxu0
  %v2491 = vadd.f32 %v2396, %v2490
  %v2492 = vpop.f32.mrb[0].mxu0
  %2493 = vdwg.mxu0
  %2494 = vmatprep.subr.mxu0 0.0
  %v2495 = vand.u32 %v2019, 4294901760
  %2496 = vmatpush1.msra.mxu0 %v2495
  %2497 = vmatprep.subr.mxu0 0.0
  %v2498 = vand.u32 %v2020, 4294901760
  %2499 = vmatpush1.msra.mxu0 %v2498
  %2500 = vmatprep.subr.mxu0 0.0
  %v2501 = vand.u32 %v2021, 4294901760
  %2502 = vmatpush1.msra.mxu0 %v2501
  %2503 = vmatprep.subr.mxu0 0.0
  %v2504 = vand.u32 %v2022, 4294901760
  %2505 = vmatpush1.msra.mxu0 %v2504
  %2506 = vmatprep.subr.mxu0 0.0
  %v2507 = vand.u32 %v2023, 4294901760
  %2508 = vmatpush1.msra.mxu0 %v2507
  %2509 = vmatprep.subr.mxu0 0.0
  %v2510 = vand.u32 %v2024, 4294901760
  %2511 = vmatpush1.msra.mxu0 %v2510
  %2512 = vmatprep.subr.mxu0 0.0
  %v2513 = vand.u32 %v2025, 4294901760
  %2514 = vmatpush1.msra.mxu0 %v2513
  %2515 = vmatprep.subr.mxu0 0.0
  %v2516 = vand.u32 %v2026, 4294901760
  %2517 = vmatpush1.msra.mxu0 %v2516
  %2518 = vmatprep.subr.mxu0 0.0
  %2519 = vmatpush1.msra.mxu0 0.0
  %2520 = vmatprep.subr.mxu0 0.0
  %2521 = vmatpush1.msra.mxu0 0.0
  %2522 = vmatprep.subr.mxu0 0.0
  %2523 = vmatpush1.msra.mxu0 0.0
  %2524 = vmatprep.subr.mxu0 0.0
  %2525 = vmatpush1.msra.mxu0 0.0
  %2526 = vmatprep.subr.mxu0 0.0
  %2527 = vmatpush1.msra.mxu0 0.0
  %2528 = vmatprep.subr.mxu0 0.0
  %2529 = vmatpush1.msra.mxu0 0.0
  %2530 = vmatprep.subr.mxu0 0.0
  %2531 = vmatpush1.msra.mxu0 0.0
  %2532 = vmatprep.subr.mxu0 0.0
  %2533 = vmatpush1.msra.mxu0 0.0
  %2534 = vmatprep.subr.mxu0 0.0
  %2535 = vmatpush1.msra.mxu0 0.0
  %2536 = vmatprep.subr.mxu0 0.0
  %2537 = vmatpush1.msra.mxu0 0.0
  %2538 = vmatprep.subr.mxu0 0.0
  %2539 = vmatpush1.msra.mxu0 0.0
  %2540 = vmatprep.subr.mxu0 0.0
  %2541 = vmatpush1.msra.mxu0 0.0
  %2542 = vmatprep.subr.mxu0 0.0
  %2543 = vmatpush1.msra.mxu0 0.0
  %2544 = vmatprep.subr.mxu0 0.0
  %2545 = vmatpush1.msra.mxu0 0.0
  %2546 = vmatprep.subr.mxu0 0.0
  %2547 = vmatpush1.msra.mxu0 0.0
  %2548 = vmatprep.subr.mxu0 0.0
  %2549 = vmatpush1.msra.mxu0 0.0
  %2550 = vmatprep.subr.mxu0 0.0
  %2551 = vmatpush1.msra.mxu0 0.0
  %2552 = vmatprep.subr.mxu0 0.0
  %2553 = vmatpush1.msra.mxu0 0.0
  %2554 = vmatprep.subr.mxu0 0.0
  %2555 = vmatpush1.msra.mxu0 0.0
  %2556 = vmatprep.subr.mxu0 0.0
  %2557 = vmatpush1.msra.mxu0 0.0
  %2558 = vmatprep.subr.mxu0 0.0
  %2559 = vmatpush1.msra.mxu0 0.0
  %2560 = vmatprep.subr.mxu0 0.0
  %2561 = vmatpush1.msra.mxu0 0.0
  %2562 = vmatprep.subr.mxu0 0.0
  %2563 = vmatpush1.msra.mxu0 0.0
  %2564 = vmatprep.subr.mxu0 0.0
  %2565 = vmatpush1.msra.mxu0 0.0
  %2566 = vmatprep.mubr.f32.mxu0 0.0
  %v2567 = vand.u32 %v2034, 4294901760
  %2568 = vmatmul.mubr.f32.gmra.mrb[0].mxu0 %v2567
  %v2569 = vpop.f32.mrb[0].mxu0
  %v2570 = vadd.f32 %v2491, %v2569
  %v2571 = vpop.f32.mrb[0].mxu0
  %2572 = vdwg.mxu0
  %2573 = vst [vmem:[%s5] sm:$0x1] %v2570
  // Predicated region
  $region22: #{net_forward.1} parent=0 // pred_check
    _
  $region23: #{net_forward.1} parent=0 // pred_check_branch
    %2575 = sbr.rel (0) target = $region25
  $region24: #{net_forward.1} parent=0 // pred_region
    _
  $region25: #{net_forward.1} parent=0 // pred_fallthru
    _
  // Predicated region
  $region26: #{net_forward.1} parent=0 // pred_check
    _
  $region27: #{net_forward.1} parent=0 // pred_check_branch
    %2577 = sbr.rel (0) target = $region29
  $region28: #{net_forward.1} parent=0 // pred_region
    _
  $region29: #{net_forward.1} parent=0 // pred_fallthru
    _

</llo_original>
